<compile_context>
chip_gen: v5e
topology: v5e:2x2
jax: 0.10.0
libtpu: 0.0.40
codegen_flags: <defaults>
</compile_context>

<pallas_src>
import functools

import jax
import jax.numpy as jnp
from jax import lax
from jax.experimental import pallas as pl
from jax.experimental.pallas import tpu as pltpu


def _conv_bn_relu_kernel(x_ref, w_ref, scale_ref, shift_ref, out_ref,
                         *, kh, kw, ho, wo):
    # x_ref:     [1, H, W, Cin]        (VMEM, one image per grid step)
    # w_ref:     [KH*KW*Cin, Cout]     (VMEM, im2col-ordered weights)
    # scale_ref: [1, Cout]             gamma / sqrt(running_var + eps)
    # shift_ref: [1, Cout]             beta - running_mean * scale
    # out_ref:   [1, Ho, Wo, Cout]
    #
    # In-kernel im2col: concatenate the KH*KW shifted windows along the
    # channel (lane) axis -> one [1, Ho, Wo, K] patch, then a single MXU
    # contraction over K (bf16 operands, f32 accumulation).
    taps = [x_ref[:, i:i + ho, j:j + wo, :]            # each [1, Ho, Wo, Cin]
            for i in range(kh) for j in range(kw)]
    patch = jnp.concatenate(taps, axis=-1).astype(jnp.bfloat16)  # [1,Ho,Wo,K]
    w = w_ref[...].astype(jnp.bfloat16)                          # [K, Cout]

    acc = lax.dot_general(                                       # [1,Ho,Wo,Cout]
        patch, w,
        dimension_numbers=(((3,), (0,)), ((), ())),
        preferred_element_type=jnp.float32)

    # Fused BatchNorm (eval) affine + ReLU epilogue, all f32 on the VPU.
    y = acc * scale_ref[...] + shift_ref[...]
    out_ref[...] = jnp.maximum(y, 0.0).astype(out_ref.dtype)


def conv_bn_relu(x_nchw, w_oihw, gamma, beta, running_mean, running_var,
                 eps=1e-3):
    """Forward of Conv2d(bias=False, stride=1, pad=0) -> BatchNorm2d(eval) -> ReLU."""
    n, cin, h, w = x_nchw.shape
    cout, cin_w, kh, kw = w_oihw.shape
    assert cin == cin_w
    ho, wo = h - kh + 1, w - kw + 1
    k = kh * kw * cin

    # Glue / parameter setup (layout + BN folding), done once outside the kernel.
    x_nhwc = jnp.transpose(x_nchw, (0, 2, 3, 1))                  # NCHW -> NHWC
    # OIHW -> (KH, KW, Cin, Cout) -> [K, Cout]; K index = (i*KW + j)*Cin + c,
    # matching the in-kernel tap-concatenation order.
    w2d = jnp.transpose(w_oihw, (2, 3, 1, 0)).reshape(k, cout)
    scale_1d = gamma * lax.rsqrt(running_var + eps)
    shift_1d = beta - running_mean * scale_1d
    scale = scale_1d.reshape(1, cout)
    shift = shift_1d.reshape(1, cout)

    kernel = functools.partial(_conv_bn_relu_kernel, kh=kh, kw=kw, ho=ho, wo=wo)

    out_nhwc = pl.pallas_call(
        kernel,
        grid=(n,),
        in_specs=[
            pl.BlockSpec((1, h, w, cin), lambda b: (b, 0, 0, 0)),
            pl.BlockSpec((k, cout), lambda b: (0, 0)),
            pl.BlockSpec((1, cout), lambda b: (0, 0)),
            pl.BlockSpec((1, cout), lambda b: (0, 0)),
        ],
        out_specs=pl.BlockSpec((1, ho, wo, cout), lambda b: (b, 0, 0, 0)),
        out_shape=jax.ShapeDtypeStruct((n, ho, wo, cout), jnp.float32),
        compiler_params=pltpu.CompilerParams(
            dimension_semantics=("parallel",)),
    )(x_nhwc, w2d, scale, shift)

    return jnp.transpose(out_nhwc, (0, 3, 1, 2))                  # NHWC -> NCHW


def _reference(x_nchw, w_oihw, gamma, beta, running_mean, running_var, eps=1e-3):
    y = lax.conv_general_dilated(
        x_nchw, w_oihw, window_strides=(1, 1), padding="VALID",
        dimension_numbers=("NCHW", "OIHW", "NCHW"))
    scale = (gamma / jnp.sqrt(running_var + eps)).reshape(1, -1, 1, 1)
    shift = (beta - running_mean * gamma / jnp.sqrt(running_var + eps)).reshape(1, -1, 1, 1)
    return jnp.maximum(y * scale + shift, 0.0)


if __name__ == "__main__":
    # Module config: Conv_Bn_Relu(in_channels=4, out_channels=32, kernel_size=3)
    N, CIN, H, W = 2, 4, 16, 16
    COUT, KH, KW = 32, 3, 3

    key = jax.random.PRNGKey(0)
    kx, kw_, kg, kb, km, kv = jax.random.split(key, 6)

    x = jax.random.normal(kx, (N, CIN, H, W), jnp.float32)
    conv_w = jax.random.normal(kw_, (COUT, CIN, KH, KW), jnp.float32) * 0.1
    gamma = jax.random.normal(kg, (COUT,), jnp.float32) * 0.1 + 1.0
    beta = jax.random.normal(kb, (COUT,), jnp.float32) * 0.1
    running_mean = jax.random.normal(km, (COUT,), jnp.float32) * 0.1
    running_var = jax.random.uniform(kv, (COUT,), jnp.float32) + 0.5

    out = conv_bn_relu(x, conv_w, gamma, beta, running_mean, running_var)
    out = jax.block_until_ready(out)

    ref = _reference(x, conv_w, gamma, beta, running_mean, running_var)
    assert out.shape == (N, COUT, H - KH + 1, W - KW + 1)
    # bf16 MXU operands with f32 accumulation: compare at bf16-appropriate tolerance.
    assert jnp.allclose(out, ref, rtol=1e-2, atol=1e-2)

    print("KERNEL_OK")
</pallas_src>

<mosaic_0001>
module attributes {stable_mosaic.version = 11 : i64} {
  func.func @_conv_bn_relu_kernel(%arg0: i32, %arg1: memref<1x16x16x4xf32, #tpu.memory_space<vmem>>, %arg2: memref<36x32xf32, #tpu.memory_space<vmem>>, %arg3: memref<1x32xf32, #tpu.memory_space<vmem>>, %arg4: memref<1x32xf32, #tpu.memory_space<vmem>>, %arg5: memref<1x14x14x32xf32, #tpu.memory_space<vmem>>) attributes {dimension_semantics = [#tpu.dimension_semantics<parallel>], iteration_bounds = array<i64: 2>, scalar_prefetch = 0 : i64, scratch_operands = 0 : i64, tpu.core_type = #tpu.core_type<tc>, window_params = [{transform_indices = @transform_0, window_bounds = array<i64: 1, 16, 16, 4>}, {pipeline_mode = #tpu.pipeline_mode<synchronous>, transform_indices = @transform_1, window_bounds = array<i64: 36, 32>}, {pipeline_mode = #tpu.pipeline_mode<synchronous>, transform_indices = @transform_2, window_bounds = array<i64: 1, 32>}, {pipeline_mode = #tpu.pipeline_mode<synchronous>, transform_indices = @transform_3, window_bounds = array<i64: 1, 32>}, {transform_indices = @transform_4, window_bounds = array<i64: 1, 14, 14, 32>}]} {
    %c0 = arith.constant 0 : index
    %c0_0 = arith.constant 0 : index
    %c0_1 = arith.constant 0 : index
    %c0_2 = arith.constant 0 : index
    %0 = vector.load %arg1[%c0, %c0_0, %c0_1, %c0_2] : memref<1x16x16x4xf32, #tpu.memory_space<vmem>>, vector<1x14x14x4xf32>
    %c0_3 = arith.constant 0 : index
    %c0_4 = arith.constant 0 : index
    %c1 = arith.constant 1 : index
    %c0_5 = arith.constant 0 : index
    %1 = vector.load %arg1[%c0_3, %c0_4, %c1, %c0_5] : memref<1x16x16x4xf32, #tpu.memory_space<vmem>>, vector<1x14x14x4xf32>
    %c0_6 = arith.constant 0 : index
    %c0_7 = arith.constant 0 : index
    %c2 = arith.constant 2 : index
    %c0_8 = arith.constant 0 : index
    %2 = vector.load %arg1[%c0_6, %c0_7, %c2, %c0_8] : memref<1x16x16x4xf32, #tpu.memory_space<vmem>>, vector<1x14x14x4xf32>
    %c0_9 = arith.constant 0 : index
    %c1_10 = arith.constant 1 : index
    %c0_11 = arith.constant 0 : index
    %c0_12 = arith.constant 0 : index
    %3 = vector.load %arg1[%c0_9, %c1_10, %c0_11, %c0_12] : memref<1x16x16x4xf32, #tpu.memory_space<vmem>>, vector<1x14x14x4xf32>
    %c0_13 = arith.constant 0 : index
    %c1_14 = arith.constant 1 : index
    %c1_15 = arith.constant 1 : index
    %c0_16 = arith.constant 0 : index
    %4 = vector.load %arg1[%c0_13, %c1_14, %c1_15, %c0_16] : memref<1x16x16x4xf32, #tpu.memory_space<vmem>>, vector<1x14x14x4xf32>
    %c0_17 = arith.constant 0 : index
    %c1_18 = arith.constant 1 : index
    %c2_19 = arith.constant 2 : index
    %c0_20 = arith.constant 0 : index
    %5 = vector.load %arg1[%c0_17, %c1_18, %c2_19, %c0_20] : memref<1x16x16x4xf32, #tpu.memory_space<vmem>>, vector<1x14x14x4xf32>
    %c0_21 = arith.constant 0 : index
    %c2_22 = arith.constant 2 : index
    %c0_23 = arith.constant 0 : index
    %c0_24 = arith.constant 0 : index
    %6 = vector.load %arg1[%c0_21, %c2_22, %c0_23, %c0_24] : memref<1x16x16x4xf32, #tpu.memory_space<vmem>>, vector<1x14x14x4xf32>
    %c0_25 = arith.constant 0 : index
    %c2_26 = arith.constant 2 : index
    %c1_27 = arith.constant 1 : index
    %c0_28 = arith.constant 0 : index
    %7 = vector.load %arg1[%c0_25, %c2_26, %c1_27, %c0_28] : memref<1x16x16x4xf32, #tpu.memory_space<vmem>>, vector<1x14x14x4xf32>
    %c0_29 = arith.constant 0 : index
    %c2_30 = arith.constant 2 : index
    %c2_31 = arith.constant 2 : index
    %c0_32 = arith.constant 0 : index
    %8 = vector.load %arg1[%c0_29, %c2_30, %c2_31, %c0_32] : memref<1x16x16x4xf32, #tpu.memory_space<vmem>>, vector<1x14x14x4xf32>
    %9 = tpu.concatenate %0, %1, %2, %3, %4, %5, %6, %7, %8 in 3 : vector<1x14x14x4xf32>, vector<1x14x14x4xf32>, vector<1x14x14x4xf32>, vector<1x14x14x4xf32>, vector<1x14x14x4xf32>, vector<1x14x14x4xf32>, vector<1x14x14x4xf32>, vector<1x14x14x4xf32>, vector<1x14x14x4xf32> -> vector<1x14x14x36xf32>
    %10 = arith.truncf %9 : vector<1x14x14x36xf32> to vector<1x14x14x36xbf16>
    %c0_33 = arith.constant 0 : index
    %c0_34 = arith.constant 0 : index
    %11 = vector.load %arg2[%c0_33, %c0_34] : memref<36x32xf32, #tpu.memory_space<vmem>>, vector<36x32xf32>
    %12 = arith.truncf %11 : vector<36x32xf32> to vector<36x32xbf16>
    %cst = arith.constant dense<0.000000e+00> : vector<1x14x14x32xf32>
    %13 = tpu.matmul %10, %12, %cst {dimension_numbers = #tpu.dot_dimension_numbers<[3], [0], [0, 1, 2], [1], [0, 0, 0, 1, 0, 2, 1, 1], [], []>} : vector<1x14x14x36xbf16>, vector<36x32xbf16>, vector<1x14x14x32xf32> -> vector<1x14x14x32xf32>
    %c0_35 = arith.constant 0 : index
    %c0_36 = arith.constant 0 : index
    %14 = vector.load %arg3[%c0_35, %c0_36] : memref<1x32xf32, #tpu.memory_space<vmem>>, vector<1x32xf32>
    %15 = vector.shape_cast %14 : vector<1x32xf32> to vector<1x1x1x32xf32>
    %16 = vector.broadcast %15 : vector<1x1x1x32xf32> to vector<1x14x14x32xf32>
    %17 = arith.mulf %13, %16 : vector<1x14x14x32xf32>
    %c0_37 = arith.constant 0 : index
    %c0_38 = arith.constant 0 : index
    %18 = vector.load %arg4[%c0_37, %c0_38] : memref<1x32xf32, #tpu.memory_space<vmem>>, vector<1x32xf32>
    %19 = vector.shape_cast %18 : vector<1x32xf32> to vector<1x1x1x32xf32>
    %20 = vector.broadcast %19 : vector<1x1x1x32xf32> to vector<1x14x14x32xf32>
    %21 = arith.addf %17, %20 : vector<1x14x14x32xf32>
    %cst_39 = arith.constant 0.000000e+00 : f32
    %22 = vector.broadcast %cst_39 : f32 to vector<1x14x14x32xf32>
    %23 = arith.maximumf %21, %22 : vector<1x14x14x32xf32>
    %c0_40 = arith.constant 0 : index
    %c0_41 = arith.constant 0 : index
    %c0_42 = arith.constant 0 : index
    %c0_43 = arith.constant 0 : index
    %24 = vector.load %arg5[%c0_40, %c0_41, %c0_42, %c0_43] : memref<1x14x14x32xf32, #tpu.memory_space<vmem>>, vector<1x14x14x32xf32>
    tpu.vector_store %arg5[%c0_40, %c0_41, %c0_42, %c0_43], %23 {strides = array<i32>} : memref<1x14x14x32xf32, #tpu.memory_space<vmem>>, vector<1x14x14x32xf32>,
    return
  }
  func.func @transform_0(%arg0: i32) -> (i32, i32, i32, i32) {
    %c0_i32 = arith.constant 0 : i32
    %c0_i32_0 = arith.constant 0 : i32
    %c0_i32_1 = arith.constant 0 : i32
    %c0_i32_2 = arith.constant 0 : i32
    return %arg0, %c0_i32, %c0_i32_0, %c0_i32_1 : i32, i32, i32, i32
  }
  func.func @transform_1(%arg0: i32) -> (i32, i32) {
    %c0_i32 = arith.constant 0 : i32
    %c0_i32_0 = arith.constant 0 : i32
    %c0_i32_1 = arith.constant 0 : i32
    return %c0_i32, %c0_i32_0 : i32, i32
  }
  func.func @transform_2(%arg0: i32) -> (i32, i32) {
    %c0_i32 = arith.constant 0 : i32
    %c0_i32_0 = arith.constant 0 : i32
    %c0_i32_1 = arith.constant 0 : i32
    return %c0_i32, %c0_i32_0 : i32, i32
  }
  func.func @transform_3(%arg0: i32) -> (i32, i32) {
    %c0_i32 = arith.constant 0 : i32
    %c0_i32_0 = arith.constant 0 : i32
    %c0_i32_1 = arith.constant 0 : i32
    return %c0_i32, %c0_i32_0 : i32, i32
  }
  func.func @transform_4(%arg0: i32) -> (i32, i32, i32, i32) {
    %c0_i32 = arith.constant 0 : i32
    %c0_i32_0 = arith.constant 0 : i32
    %c0_i32_1 = arith.constant 0 : i32
    %c0_i32_2 = arith.constant 0 : i32
    return %arg0, %c0_i32, %c0_i32_0, %c0_i32_1 : i32, i32, i32, i32
  }
}

</mosaic_0001>

<llo_original>
// kernel: tpu_custom_call.1
$region0: #{tpu_custom_call.1}
  #allocation0 [shape = 'u32[]', space=smem, size = 0x4, offset = 0x4, fixed_abs, tag = 'smem constant byte address 0x4 - core index']
  #allocation1 [shape = 'u32[72,128]{1,0:T(1,128)}', space=vmem, size = 0x9000, scoped, tag = 'internal scratch']
  %s0 = inlined_call_operand.vmem [shape: f32[2,16,16,4], index: 0, kind: input, shape index: {}]
  %s1 = inlined_call_operand.vmem [shape: f32[36,32], index: 1, kind: input, shape index: {}]
  %s2 = inlined_call_operand.vmem [shape: f32[1,32], index: 2, kind: input, shape index: {}]
  %s3 = inlined_call_operand.vmem [shape: f32[1,32], index: 3, kind: input, shape index: {}]
  %s4 = inlined_call_operand.vmem [shape: f32[2,14,14,32], index: 4, kind: output, shape index: {}]
  %s5 = sld [smem:[#allocation0]]
  $region49: #{tpu_custom_call.1} parent=0
    _
  %s7 = ssub.s32 1, %s5
  %s8 = scalar_select 0, %s7, %s5
  loop: start=0, step=1, limit=4
  $region2: #{tpu_custom_call.1} parent=0 // loop_pre_header
    _
  $region3: #{tpu_custom_call.1} parent=0 // loop_header
    %s10 = sphi 0, %s14
    %p11 = scmp.ge.s32.totalorder %s10, 4
    %s20 = sphi 0, %s22
    %s23 = sphi 0, %s20
    %s24 = sphi 0, %s23
    %s40 = sphi 0, %s24
    %s44 = sphi 0, %s44
    %s46 = sphi 0, %s44
    %s47 = sphi 0, %s46
    %s61 = sphi 0, %s47
    %s65 = sphi 0, %s65
    %s67 = sphi 0, %s65
    %s68 = sphi 0, %s67
    %s82 = sphi 0, %s68
    %s86 = sphi 0, %s86
    %s88 = sphi 0, %s86
    %s89 = sphi 0, %s88
    %s103 = sphi 0, %s89
    %s109 = sphi 0, %s111
    %s112 = sphi 0, %s109
    %s113 = sphi 0, %s112
    %s129 = sphi 0, %s113
  $region4: #{tpu_custom_call.1} parent=0 // loop_header_branch
    %13 = sbr.rel (%p11) target = $region8
  $region5: #{tpu_custom_call.1} parent=0 // loop_body
    %s15 = ssub.s32 %s10, 1
    %s16 = ssub.s32 %s10, 2
    %s17 = sadd.s32 %s10, 1
    %s18 = ssub.s32 %s10, %s17
    %p19 = scmp.eq.s32.totalorder %s18, 0
    %s21 = sadd.s32 %s20, 1
    %s22 = scalar_select %p19, %s20, %s21
    %p25 = pneg %p19
    %p26 = scmp.eq.s32.totalorder %s10, 1
    %p27 = por %p25, %p26
    %p28 = scmp.ne.s32.totalorder %s20, %s23
    %p29 = scmp.eq.s32.totalorder %s10, 0
    %p30 = por %p28, %p29
    %p31 = scmp.ne.s32.totalorder %s20, %s23
    %p32 = scmp.eq.s32.totalorder %s15, 1
    %p33 = por %p31, %p32
    %p34 = scmp.ne.s32.totalorder %s23, %s24
    %p35 = scmp.eq.s32.totalorder %s15, 0
    %p36 = por %p34, %p35
    %p37 = scmp.ne.s32.totalorder %s23, %s24
    %p38 = scmp.eq.s32.totalorder %s16, 1
    %p39 = por %p37, %p38
    %p41 = scmp.ne.s32.totalorder %s24, %s40
    %p42 = scmp.eq.s32.totalorder %s16, 0
    %p43 = por %p41, %p42
    %s45 = sadd.s32 %s44, 1
    %p48 = scmp.eq.s32.totalorder %s10, 1
    %p49 = scmp.ne.s32.totalorder %s44, %s46
    %p50 = scmp.eq.s32.totalorder %s10, 0
    %p51 = por %p49, %p50
    %p52 = scmp.ne.s32.totalorder %s44, %s46
    %p53 = scmp.eq.s32.totalorder %s15, 1
    %p54 = por %p52, %p53
    %p55 = scmp.ne.s32.totalorder %s46, %s47
    %p56 = scmp.eq.s32.totalorder %s15, 0
    %p57 = por %p55, %p56
    %p58 = scmp.ne.s32.totalorder %s46, %s47
    %p59 = scmp.eq.s32.totalorder %s16, 1
    %p60 = por %p58, %p59
    %p62 = scmp.ne.s32.totalorder %s47, %s61
    %p63 = scmp.eq.s32.totalorder %s16, 0
    %p64 = por %p62, %p63
    %s66 = sadd.s32 %s65, 1
    %p69 = scmp.eq.s32.totalorder %s10, 1
    %p70 = scmp.ne.s32.totalorder %s65, %s67
    %p71 = scmp.eq.s32.totalorder %s10, 0
    %p72 = por %p70, %p71
    %p73 = scmp.ne.s32.totalorder %s65, %s67
    %p74 = scmp.eq.s32.totalorder %s15, 1
    %p75 = por %p73, %p74
    %p76 = scmp.ne.s32.totalorder %s67, %s68
    %p77 = scmp.eq.s32.totalorder %s15, 0
    %p78 = por %p76, %p77
    %p79 = scmp.ne.s32.totalorder %s67, %s68
    %p80 = scmp.eq.s32.totalorder %s16, 1
    %p81 = por %p79, %p80
    %p83 = scmp.ne.s32.totalorder %s68, %s82
    %p84 = scmp.eq.s32.totalorder %s16, 0
    %p85 = por %p83, %p84
    %s87 = sadd.s32 %s86, 1
    %p90 = scmp.eq.s32.totalorder %s10, 1
    %p91 = scmp.ne.s32.totalorder %s86, %s88
    %p92 = scmp.eq.s32.totalorder %s10, 0
    %p93 = por %p91, %p92
    %p94 = scmp.ne.s32.totalorder %s86, %s88
    %p95 = scmp.eq.s32.totalorder %s15, 1
    %p96 = por %p94, %p95
    %p97 = scmp.ne.s32.totalorder %s88, %s89
    %p98 = scmp.eq.s32.totalorder %s15, 0
    %p99 = por %p97, %p98
    %p100 = scmp.ne.s32.totalorder %s88, %s89
    %p101 = scmp.eq.s32.totalorder %s16, 1
    %p102 = por %p100, %p101
    %p104 = scmp.ne.s32.totalorder %s89, %s103
    %p105 = scmp.eq.s32.totalorder %s16, 0
    %p106 = por %p104, %p105
    %s107 = ssub.s32 %s10, %s17
    %p108 = scmp.eq.s32.totalorder %s107, 0
    %s110 = sadd.s32 %s109, 1
    %s111 = scalar_select %p108, %s109, %s110
    %p114 = pneg %p108
    %p115 = scmp.eq.s32.totalorder %s10, 1
    %p116 = por %p114, %p115
    %p117 = scmp.ne.s32.totalorder %s109, %s112
    %p118 = scmp.eq.s32.totalorder %s10, 0
    %p119 = por %p117, %p118
    %p120 = scmp.ne.s32.totalorder %s109, %s112
    %p121 = scmp.eq.s32.totalorder %s15, 1
    %p122 = por %p120, %p121
    %p123 = scmp.ne.s32.totalorder %s112, %s113
    %p124 = scmp.eq.s32.totalorder %s15, 0
    %p125 = por %p123, %p124
    %p126 = scmp.ne.s32.totalorder %s112, %s113
    %p127 = scmp.eq.s32.totalorder %s16, 1
    %p128 = por %p126, %p127
    %p130 = scmp.ne.s32.totalorder %s113, %s129
    %p131 = scmp.eq.s32.totalorder %s16, 0
    %p132 = por %p130, %p131
    %p133 = scmp.le.s32.totalorder 1, %s10
    %p134 = scmp.lt.s32.totalorder %s10, 3
    %p135 = pnand %p133, %p134
    %p136 = pneg %p135
    // Predicated region
    $region9: #{tpu_custom_call.1} parent=5 // pred_check
      _
    $region10: #{tpu_custom_call.1} parent=5 // pred_check_branch
      %138 = sbr.rel (%p135) target = $region12
    $region11: #{tpu_custom_call.1} parent=5 // pred_region
      %s139 = ssub.s32 %s10, 1
      // Predicated region
      $region13: #{tpu_custom_call.1} parent=11 // pred_check
        %p140 = pneg %p57
      $region14: #{tpu_custom_call.1} parent=11 // pred_check_branch
        %142 = sbr.rel (%p140) target = $region16
      $region15: #{tpu_custom_call.1} parent=11 // pred_region
        _
      $region16: #{tpu_custom_call.1} parent=11 // pred_fallthru
        _
      // Predicated region
      $region17: #{tpu_custom_call.1} parent=11 // pred_check
        %p143 = pneg %p78
      $region18: #{tpu_custom_call.1} parent=11 // pred_check_branch
        %145 = sbr.rel (%p143) target = $region20
      $region19: #{tpu_custom_call.1} parent=11 // pred_region
        _
      $region20: #{tpu_custom_call.1} parent=11 // pred_fallthru
        _
      // Predicated region
      $region21: #{tpu_custom_call.1} parent=11 // pred_check
        %p146 = pneg %p99
      $region22: #{tpu_custom_call.1} parent=11 // pred_check_branch
        %148 = sbr.rel (%p146) target = $region24
      $region23: #{tpu_custom_call.1} parent=11 // pred_region
        _
      $region24: #{tpu_custom_call.1} parent=11 // pred_fallthru
        _
    $region12: #{tpu_custom_call.1} parent=5 // pred_fallthru
      _
    %p149 = scmp.lt.s32.totalorder %s10, 2
    // Predicated region
    $region25: #{tpu_custom_call.1} parent=5 // pred_check
      %p150 = pneg %p149
    $region26: #{tpu_custom_call.1} parent=5 // pred_check_branch
      %152 = sbr.rel (%p150) target = $region28
    $region27: #{tpu_custom_call.1} parent=5 // pred_region
      // Predicated region
      $region29: #{tpu_custom_call.1} parent=27 // pred_check
        %p153 = pneg %p30
      $region30: #{tpu_custom_call.1} parent=27 // pred_check_branch
        %155 = sbr.rel (%p153) target = $region32
      $region31: #{tpu_custom_call.1} parent=27 // pred_region
        %p156 = scmp.lt.s32.totalorder %s10, 1
        %s157 = scalar_select %p156, %s10, 1
        %s158 = smul.addr %s157, 32
        %s159 = smul.addr %s158, 8
        %s160 = scalar_lea.vmem %s0, %s159
      $region32: #{tpu_custom_call.1} parent=27 // pred_fallthru
        _
    $region28: #{tpu_custom_call.1} parent=5 // pred_fallthru
      _
    %p161 = scmp.le.s32.totalorder 1, %s10
    %p162 = scmp.lt.s32.totalorder %s10, 3
    %p163 = pnand %p161, %p162
    %p164 = pneg %p163
    // Predicated region
    $region33: #{tpu_custom_call.1} parent=5 // pred_check
      _
    $region34: #{tpu_custom_call.1} parent=5 // pred_check_branch
      %166 = sbr.rel (%p163) target = $region36
    $region35: #{tpu_custom_call.1} parent=5 // pred_region
      %s167 = ssub.s32 %s10, 1
      %p168 = scmp.lt.s32.totalorder %s15, 1
      %s169 = scalar_select %p168, %s15, 1
      %s170 = smul.addr %s169, 32
      %s171 = smul.addr %s170, 8
      %s172 = scalar_lea.vmem %s0, %s171
      %p173 = pneg %p36
      %p174 = pneg %p33
      %p175 = pneg %p57
      %p176 = pneg %p54
      %p177 = pneg %p78
      %p178 = pneg %p75
      %p179 = pneg %p99
      %p180 = pneg %p96
      %p181 = pneg %p125
      %p182 = pneg %p122
      %p183 = scmp.lt.s32.totalorder %s15, 1
      %s184 = scalar_select %p183, %s15, 1
      %s185 = smul.addr %s184, 28
      %s186 = smul.addr %s185, 8
      %s187 = scalar_lea.vmem %s4, %s186
      %p188 = scmp.lt.s32.totalorder %s15, 1
      %s189 = scalar_select %p188, %s15, 1
      %s190 = smul.addr %s189, 32
      %s191 = smul.addr %s190, 8
      %s192 = scalar_lea.vmem %s0, %s191
      %p193 = scmp.lt.s32.totalorder %s15, 1
      %s194 = scalar_select %p193, %s15, 1
      %s195 = smul.addr %s194, 28
      %s196 = smul.addr %s195, 8
      %s197 = scalar_lea.vmem %s4, %s196
      %v199 = vld [vmem:[%s192] sm:$0xff]
      %v200 = vld [vmem:[%s192 + $0x8] sm:$0x3f]
      %v201 = vld [vmem:[%s192 + $0x10] sm:$0xff]
      %v202 = vld [vmem:[%s192 + $0x18] sm:$0x3f]
      %v203 = vld [vmem:[%s192 + $0x20] sm:$0xff]
      %v204 = vld [vmem:[%s192 + $0x28] sm:$0x3f]
      %v205 = vld [vmem:[%s192 + $0x30] sm:$0xff]
      %v206 = vld [vmem:[%s192 + $0x38] sm:$0x3f]
      %v207 = vld [vmem:[%s192 + $0x40] sm:$0xff]
      %v208 = vld [vmem:[%s192 + $0x48] sm:$0x3f]
      %v209 = vld [vmem:[%s192 + $0x50] sm:$0xff]
      %v210 = vld [vmem:[%s192 + $0x58] sm:$0x3f]
      %v211 = vld [vmem:[%s192 + $0x60] sm:$0xff]
      %v212 = vld [vmem:[%s192 + $0x68] sm:$0x3f]
      %v213 = vld [vmem:[%s192 + $0x70] sm:$0xff]
      %v214 = vld [vmem:[%s192 + $0x78] sm:$0x3f]
      %v215 = vld [vmem:[%s192 + $0x80] sm:$0xff]
      %v216 = vld [vmem:[%s192 + $0x88] sm:$0x3f]
      %v217 = vld [vmem:[%s192 + $0x90] sm:$0xff]
      %v218 = vld [vmem:[%s192 + $0x98] sm:$0x3f]
      %v219 = vld [vmem:[%s192 + $0xa0] sm:$0xff]
      %v220 = vld [vmem:[%s192 + $0xa8] sm:$0x3f]
      %v221 = vld [vmem:[%s192 + $0xb0] sm:$0xff]
      %v222 = vld [vmem:[%s192 + $0xb8] sm:$0x3f]
      %v223 = vld [vmem:[%s192 + $0xc0] sm:$0xff]
      %v224 = vld [vmem:[%s192 + $0xc8] sm:$0x3f]
      %v225 = vld [vmem:[%s192 + $0xd0] sm:$0xff]
      %v226 = vld [vmem:[%s192 + $0xd8] sm:$0x3f]
      %v227 = vld [vmem:[%s192 + $0x1] sm:$0xff]
      %v228 = vld [vmem:[%s192 + $0x9] sm:$0x3f]
      %v229 = vld [vmem:[%s192 + $0x11] sm:$0xff]
      %v230 = vld [vmem:[%s192 + $0x19] sm:$0x3f]
      %v231 = vld [vmem:[%s192 + $0x21] sm:$0xff]
      %v232 = vld [vmem:[%s192 + $0x29] sm:$0x3f]
      %v233 = vld [vmem:[%s192 + $0x31] sm:$0xff]
      %v234 = vld [vmem:[%s192 + $0x39] sm:$0x3f]
      %v235 = vld [vmem:[%s192 + $0x41] sm:$0xff]
      %v236 = vld [vmem:[%s192 + $0x49] sm:$0x3f]
      %v237 = vld [vmem:[%s192 + $0x51] sm:$0xff]
      %v238 = vld [vmem:[%s192 + $0x59] sm:$0x3f]
      %v239 = vld [vmem:[%s192 + $0x61] sm:$0xff]
      %v240 = vld [vmem:[%s192 + $0x69] sm:$0x3f]
      %v241 = vld [vmem:[%s192 + $0x71] sm:$0xff]
      %v242 = vld [vmem:[%s192 + $0x79] sm:$0x3f]
      %v243 = vld [vmem:[%s192 + $0x81] sm:$0xff]
      %v244 = vld [vmem:[%s192 + $0x89] sm:$0x3f]
      %v245 = vld [vmem:[%s192 + $0x91] sm:$0xff]
      %v246 = vld [vmem:[%s192 + $0x99] sm:$0x3f]
      %v247 = vld [vmem:[%s192 + $0xa1] sm:$0xff]
      %v248 = vld [vmem:[%s192 + $0xa9] sm:$0x3f]
      %v249 = vld [vmem:[%s192 + $0xb1] sm:$0xff]
      %v250 = vld [vmem:[%s192 + $0xb9] sm:$0x3f]
      %v251 = vld [vmem:[%s192 + $0xc1] sm:$0xff]
      %v252 = vld [vmem:[%s192 + $0xc9] sm:$0x3f]
      %v253 = vld [vmem:[%s192 + $0xd1] sm:$0xff]
      %v254 = vld [vmem:[%s192 + $0xd9] sm:$0x3f]
      %v255 = vld [vmem:[%s192 + $0x2] sm:$0xff]
      %v256 = vld [vmem:[%s192 + $0xa] sm:$0x3f]
      %v257 = vld [vmem:[%s192 + $0x12] sm:$0xff]
      %v258 = vld [vmem:[%s192 + $0x1a] sm:$0x3f]
      %v259 = vld [vmem:[%s192 + $0x22] sm:$0xff]
      %v260 = vld [vmem:[%s192 + $0x2a] sm:$0x3f]
      %v261 = vld [vmem:[%s192 + $0x32] sm:$0xff]
      %v262 = vld [vmem:[%s192 + $0x3a] sm:$0x3f]
      %v263 = vld [vmem:[%s192 + $0x42] sm:$0xff]
      %v264 = vld [vmem:[%s192 + $0x4a] sm:$0x3f]
      %v265 = vld [vmem:[%s192 + $0x52] sm:$0xff]
      %v266 = vld [vmem:[%s192 + $0x5a] sm:$0x3f]
      %v267 = vld [vmem:[%s192 + $0x62] sm:$0xff]
      %v268 = vld [vmem:[%s192 + $0x6a] sm:$0x3f]
      %v269 = vld [vmem:[%s192 + $0x72] sm:$0xff]
      %v270 = vld [vmem:[%s192 + $0x7a] sm:$0x3f]
      %v271 = vld [vmem:[%s192 + $0x82] sm:$0xff]
      %v272 = vld [vmem:[%s192 + $0x8a] sm:$0x3f]
      %v273 = vld [vmem:[%s192 + $0x92] sm:$0xff]
      %v274 = vld [vmem:[%s192 + $0x9a] sm:$0x3f]
      %v275 = vld [vmem:[%s192 + $0xa2] sm:$0xff]
      %v276 = vld [vmem:[%s192 + $0xaa] sm:$0x3f]
      %v277 = vld [vmem:[%s192 + $0xb2] sm:$0xff]
      %v278 = vld [vmem:[%s192 + $0xba] sm:$0x3f]
      %v279 = vld [vmem:[%s192 + $0xc2] sm:$0xff]
      %v280 = vld [vmem:[%s192 + $0xca] sm:$0x3f]
      %v281 = vld [vmem:[%s192 + $0xd2] sm:$0xff]
      %v282 = vld [vmem:[%s192 + $0xda] sm:$0x3f]
      %s283 = scalar_lea.vmem %s192, 16
      %v284 = vld [vmem:[%s283] sm:$0xff]
      %v285 = vld [vmem:[%s283 + $0x8] sm:$0x3f]
      %v286 = vld [vmem:[%s283 + $0x10] sm:$0xff]
      %v287 = vld [vmem:[%s283 + $0x18] sm:$0x3f]
      %v288 = vld [vmem:[%s283 + $0x20] sm:$0xff]
      %v289 = vld [vmem:[%s283 + $0x28] sm:$0x3f]
      %v290 = vld [vmem:[%s283 + $0x30] sm:$0xff]
      %v291 = vld [vmem:[%s283 + $0x38] sm:$0x3f]
      %v292 = vld [vmem:[%s283 + $0x40] sm:$0xff]
      %v293 = vld [vmem:[%s283 + $0x48] sm:$0x3f]
      %v294 = vld [vmem:[%s283 + $0x50] sm:$0xff]
      %v295 = vld [vmem:[%s283 + $0x58] sm:$0x3f]
      %v296 = vld [vmem:[%s283 + $0x60] sm:$0xff]
      %v297 = vld [vmem:[%s283 + $0x68] sm:$0x3f]
      %v298 = vld [vmem:[%s283 + $0x70] sm:$0xff]
      %v299 = vld [vmem:[%s283 + $0x78] sm:$0x3f]
      %v300 = vld [vmem:[%s283 + $0x80] sm:$0xff]
      %v301 = vld [vmem:[%s283 + $0x88] sm:$0x3f]
      %v302 = vld [vmem:[%s283 + $0x90] sm:$0xff]
      %v303 = vld [vmem:[%s283 + $0x98] sm:$0x3f]
      %v304 = vld [vmem:[%s283 + $0xa0] sm:$0xff]
      %v305 = vld [vmem:[%s283 + $0xa8] sm:$0x3f]
      %v306 = vld [vmem:[%s283 + $0xb0] sm:$0xff]
      %v307 = vld [vmem:[%s283 + $0xb8] sm:$0x3f]
      %v308 = vld [vmem:[%s283 + $0xc0] sm:$0xff]
      %v309 = vld [vmem:[%s283 + $0xc8] sm:$0x3f]
      %v310 = vld [vmem:[%s283 + $0xd0] sm:$0xff]
      %v311 = vld [vmem:[%s283 + $0xd8] sm:$0x3f]
      %v312 = vld [vmem:[%s283 + $0x1] sm:$0xff]
      %v313 = vld [vmem:[%s283 + $0x9] sm:$0x3f]
      %v314 = vld [vmem:[%s283 + $0x11] sm:$0xff]
      %v315 = vld [vmem:[%s283 + $0x19] sm:$0x3f]
      %v316 = vld [vmem:[%s283 + $0x21] sm:$0xff]
      %v317 = vld [vmem:[%s283 + $0x29] sm:$0x3f]
      %v318 = vld [vmem:[%s283 + $0x31] sm:$0xff]
      %v319 = vld [vmem:[%s283 + $0x39] sm:$0x3f]
      %v320 = vld [vmem:[%s283 + $0x41] sm:$0xff]
      %v321 = vld [vmem:[%s283 + $0x49] sm:$0x3f]
      %v322 = vld [vmem:[%s283 + $0x51] sm:$0xff]
      %v323 = vld [vmem:[%s283 + $0x59] sm:$0x3f]
      %v324 = vld [vmem:[%s283 + $0x61] sm:$0xff]
      %v325 = vld [vmem:[%s283 + $0x69] sm:$0x3f]
      %v326 = vld [vmem:[%s283 + $0x71] sm:$0xff]
      %v327 = vld [vmem:[%s283 + $0x79] sm:$0x3f]
      %v328 = vld [vmem:[%s283 + $0x81] sm:$0xff]
      %v329 = vld [vmem:[%s283 + $0x89] sm:$0x3f]
      %v330 = vld [vmem:[%s283 + $0x91] sm:$0xff]
      %v331 = vld [vmem:[%s283 + $0x99] sm:$0x3f]
      %v332 = vld [vmem:[%s283 + $0xa1] sm:$0xff]
      %v333 = vld [vmem:[%s283 + $0xa9] sm:$0x3f]
      %v334 = vld [vmem:[%s283 + $0xb1] sm:$0xff]
      %v335 = vld [vmem:[%s283 + $0xb9] sm:$0x3f]
      %v336 = vld [vmem:[%s283 + $0xc1] sm:$0xff]
      %v337 = vld [vmem:[%s283 + $0xc9] sm:$0x3f]
      %v338 = vld [vmem:[%s283 + $0xd1] sm:$0xff]
      %v339 = vld [vmem:[%s283 + $0xd9] sm:$0x3f]
      %v340 = vld [vmem:[%s283 + $0x2] sm:$0xff]
      %v341 = vld [vmem:[%s283 + $0xa] sm:$0x3f]
      %v342 = vld [vmem:[%s283 + $0x12] sm:$0xff]
      %v343 = vld [vmem:[%s283 + $0x1a] sm:$0x3f]
      %v344 = vld [vmem:[%s283 + $0x22] sm:$0xff]
      %v345 = vld [vmem:[%s283 + $0x2a] sm:$0x3f]
      %v346 = vld [vmem:[%s283 + $0x32] sm:$0xff]
      %v347 = vld [vmem:[%s283 + $0x3a] sm:$0x3f]
      %v348 = vld [vmem:[%s283 + $0x42] sm:$0xff]
      %v349 = vld [vmem:[%s283 + $0x4a] sm:$0x3f]
      %v350 = vld [vmem:[%s283 + $0x52] sm:$0xff]
      %v351 = vld [vmem:[%s283 + $0x5a] sm:$0x3f]
      %v352 = vld [vmem:[%s283 + $0x62] sm:$0xff]
      %v353 = vld [vmem:[%s283 + $0x6a] sm:$0x3f]
      %v354 = vld [vmem:[%s283 + $0x72] sm:$0xff]
      %v355 = vld [vmem:[%s283 + $0x7a] sm:$0x3f]
      %v356 = vld [vmem:[%s283 + $0x82] sm:$0xff]
      %v357 = vld [vmem:[%s283 + $0x8a] sm:$0x3f]
      %v358 = vld [vmem:[%s283 + $0x92] sm:$0xff]
      %v359 = vld [vmem:[%s283 + $0x9a] sm:$0x3f]
      %v360 = vld [vmem:[%s283 + $0xa2] sm:$0xff]
      %v361 = vld [vmem:[%s283 + $0xaa] sm:$0x3f]
      %v362 = vld [vmem:[%s283 + $0xb2] sm:$0xff]
      %v363 = vld [vmem:[%s283 + $0xba] sm:$0x3f]
      %v364 = vld [vmem:[%s283 + $0xc2] sm:$0xff]
      %v365 = vld [vmem:[%s283 + $0xca] sm:$0x3f]
      %v366 = vld [vmem:[%s283 + $0xd2] sm:$0xff]
      %v367 = vld [vmem:[%s283 + $0xda] sm:$0x3f]
      %s368 = scalar_lea.vmem %s192, 32
      %v369 = vld [vmem:[%s368] sm:$0xff]
      %v370 = vld [vmem:[%s368 + $0x8] sm:$0x3f]
      %v371 = vld [vmem:[%s368 + $0x10] sm:$0xff]
      %v372 = vld [vmem:[%s368 + $0x18] sm:$0x3f]
      %v373 = vld [vmem:[%s368 + $0x20] sm:$0xff]
      %v374 = vld [vmem:[%s368 + $0x28] sm:$0x3f]
      %v375 = vld [vmem:[%s368 + $0x30] sm:$0xff]
      %v376 = vld [vmem:[%s368 + $0x38] sm:$0x3f]
      %v377 = vld [vmem:[%s368 + $0x40] sm:$0xff]
      %v378 = vld [vmem:[%s368 + $0x48] sm:$0x3f]
      %v379 = vld [vmem:[%s368 + $0x50] sm:$0xff]
      %v380 = vld [vmem:[%s368 + $0x58] sm:$0x3f]
      %v381 = vld [vmem:[%s368 + $0x60] sm:$0xff]
      %v382 = vld [vmem:[%s368 + $0x68] sm:$0x3f]
      %v383 = vld [vmem:[%s368 + $0x70] sm:$0xff]
      %v384 = vld [vmem:[%s368 + $0x78] sm:$0x3f]
      %v385 = vld [vmem:[%s368 + $0x80] sm:$0xff]
      %v386 = vld [vmem:[%s368 + $0x88] sm:$0x3f]
      %v387 = vld [vmem:[%s368 + $0x90] sm:$0xff]
      %v388 = vld [vmem:[%s368 + $0x98] sm:$0x3f]
      %v389 = vld [vmem:[%s368 + $0xa0] sm:$0xff]
      %v390 = vld [vmem:[%s368 + $0xa8] sm:$0x3f]
      %v391 = vld [vmem:[%s368 + $0xb0] sm:$0xff]
      %v392 = vld [vmem:[%s368 + $0xb8] sm:$0x3f]
      %v393 = vld [vmem:[%s368 + $0xc0] sm:$0xff]
      %v394 = vld [vmem:[%s368 + $0xc8] sm:$0x3f]
      %v395 = vld [vmem:[%s368 + $0xd0] sm:$0xff]
      %v396 = vld [vmem:[%s368 + $0xd8] sm:$0x3f]
      %v397 = vld [vmem:[%s368 + $0x1] sm:$0xff]
      %v398 = vld [vmem:[%s368 + $0x9] sm:$0x3f]
      %v399 = vld [vmem:[%s368 + $0x11] sm:$0xff]
      %v400 = vld [vmem:[%s368 + $0x19] sm:$0x3f]
      %v401 = vld [vmem:[%s368 + $0x21] sm:$0xff]
      %v402 = vld [vmem:[%s368 + $0x29] sm:$0x3f]
      %v403 = vld [vmem:[%s368 + $0x31] sm:$0xff]
      %v404 = vld [vmem:[%s368 + $0x39] sm:$0x3f]
      %v405 = vld [vmem:[%s368 + $0x41] sm:$0xff]
      %v406 = vld [vmem:[%s368 + $0x49] sm:$0x3f]
      %v407 = vld [vmem:[%s368 + $0x51] sm:$0xff]
      %v408 = vld [vmem:[%s368 + $0x59] sm:$0x3f]
      %v409 = vld [vmem:[%s368 + $0x61] sm:$0xff]
      %v410 = vld [vmem:[%s368 + $0x69] sm:$0x3f]
      %v411 = vld [vmem:[%s368 + $0x71] sm:$0xff]
      %v412 = vld [vmem:[%s368 + $0x79] sm:$0x3f]
      %v413 = vld [vmem:[%s368 + $0x81] sm:$0xff]
      %v414 = vld [vmem:[%s368 + $0x89] sm:$0x3f]
      %v415 = vld [vmem:[%s368 + $0x91] sm:$0xff]
      %v416 = vld [vmem:[%s368 + $0x99] sm:$0x3f]
      %v417 = vld [vmem:[%s368 + $0xa1] sm:$0xff]
      %v418 = vld [vmem:[%s368 + $0xa9] sm:$0x3f]
      %v419 = vld [vmem:[%s368 + $0xb1] sm:$0xff]
      %v420 = vld [vmem:[%s368 + $0xb9] sm:$0x3f]
      %v421 = vld [vmem:[%s368 + $0xc1] sm:$0xff]
      %v422 = vld [vmem:[%s368 + $0xc9] sm:$0x3f]
      %v423 = vld [vmem:[%s368 + $0xd1] sm:$0xff]
      %v424 = vld [vmem:[%s368 + $0xd9] sm:$0x3f]
      %v425 = vld [vmem:[%s368 + $0x2] sm:$0xff]
      %v426 = vld [vmem:[%s368 + $0xa] sm:$0x3f]
      %v427 = vld [vmem:[%s368 + $0x12] sm:$0xff]
      %v428 = vld [vmem:[%s368 + $0x1a] sm:$0x3f]
      %v429 = vld [vmem:[%s368 + $0x22] sm:$0xff]
      %v430 = vld [vmem:[%s368 + $0x2a] sm:$0x3f]
      %v431 = vld [vmem:[%s368 + $0x32] sm:$0xff]
      %v432 = vld [vmem:[%s368 + $0x3a] sm:$0x3f]
      %v433 = vld [vmem:[%s368 + $0x42] sm:$0xff]
      %v434 = vld [vmem:[%s368 + $0x4a] sm:$0x3f]
      %v435 = vld [vmem:[%s368 + $0x52] sm:$0xff]
      %v436 = vld [vmem:[%s368 + $0x5a] sm:$0x3f]
      %v437 = vld [vmem:[%s368 + $0x62] sm:$0xff]
      %v438 = vld [vmem:[%s368 + $0x6a] sm:$0x3f]
      %v439 = vld [vmem:[%s368 + $0x72] sm:$0xff]
      %v440 = vld [vmem:[%s368 + $0x7a] sm:$0x3f]
      %v441 = vld [vmem:[%s368 + $0x82] sm:$0xff]
      %v442 = vld [vmem:[%s368 + $0x8a] sm:$0x3f]
      %v443 = vld [vmem:[%s368 + $0x92] sm:$0xff]
      %v444 = vld [vmem:[%s368 + $0x9a] sm:$0x3f]
      %v445 = vld [vmem:[%s368 + $0xa2] sm:$0xff]
      %v446 = vld [vmem:[%s368 + $0xaa] sm:$0x3f]
      %v447 = vld [vmem:[%s368 + $0xb2] sm:$0xff]
      %v448 = vld [vmem:[%s368 + $0xba] sm:$0x3f]
      %v449 = vld [vmem:[%s368 + $0xc2] sm:$0xff]
      %v450 = vld [vmem:[%s368 + $0xca] sm:$0x3f]
      %v451 = vld [vmem:[%s368 + $0xd2] sm:$0xff]
      %v452 = vld [vmem:[%s368 + $0xda] sm:$0x3f]
      %481 = vrot.lane.b32.xlu0 %v227, 4
      %v482 = vpop.permute.xlu0 %481
      %483 = vrot.lane.b32.xlu0 %v228, 4
      %v484 = vpop.permute.xlu0 %483
      %485 = vrot.lane.b32.xlu0 %v229, 4
      %v486 = vpop.permute.xlu0 %485
      %487 = vrot.lane.b32.xlu0 %v230, 4
      %v488 = vpop.permute.xlu0 %487
      %489 = vrot.lane.b32.xlu0 %v231, 4
      %v490 = vpop.permute.xlu0 %489
      %491 = vrot.lane.b32.xlu0 %v232, 4
      %v492 = vpop.permute.xlu0 %491
      %493 = vrot.lane.b32.xlu0 %v233, 4
      %v494 = vpop.permute.xlu0 %493
      %495 = vrot.lane.b32.xlu0 %v234, 4
      %v496 = vpop.permute.xlu0 %495
      %497 = vrot.lane.b32.xlu0 %v235, 4
      %v498 = vpop.permute.xlu0 %497
      %499 = vrot.lane.b32.xlu0 %v236, 4
      %v500 = vpop.permute.xlu0 %499
      %501 = vrot.lane.b32.xlu0 %v237, 4
      %v502 = vpop.permute.xlu0 %501
      %503 = vrot.lane.b32.xlu0 %v238, 4
      %v504 = vpop.permute.xlu0 %503
      %505 = vrot.lane.b32.xlu0 %v239, 4
      %v506 = vpop.permute.xlu0 %505
      %507 = vrot.lane.b32.xlu0 %v240, 4
      %v508 = vpop.permute.xlu0 %507
      %509 = vrot.lane.b32.xlu0 %v241, 4
      %v510 = vpop.permute.xlu0 %509
      %511 = vrot.lane.b32.xlu0 %v242, 4
      %v512 = vpop.permute.xlu0 %511
      %513 = vrot.lane.b32.xlu0 %v243, 4
      %v514 = vpop.permute.xlu0 %513
      %515 = vrot.lane.b32.xlu0 %v244, 4
      %v516 = vpop.permute.xlu0 %515
      %517 = vrot.lane.b32.xlu0 %v245, 4
      %v518 = vpop.permute.xlu0 %517
      %519 = vrot.lane.b32.xlu0 %v246, 4
      %v520 = vpop.permute.xlu0 %519
      %521 = vrot.lane.b32.xlu0 %v247, 4
      %v522 = vpop.permute.xlu0 %521
      %523 = vrot.lane.b32.xlu0 %v248, 4
      %v524 = vpop.permute.xlu0 %523
      %525 = vrot.lane.b32.xlu0 %v249, 4
      %v526 = vpop.permute.xlu0 %525
      %527 = vrot.lane.b32.xlu0 %v250, 4
      %v528 = vpop.permute.xlu0 %527
      %529 = vrot.lane.b32.xlu0 %v251, 4
      %v530 = vpop.permute.xlu0 %529
      %531 = vrot.lane.b32.xlu0 %v252, 4
      %v532 = vpop.permute.xlu0 %531
      %533 = vrot.lane.b32.xlu0 %v253, 4
      %v534 = vpop.permute.xlu0 %533
      %535 = vrot.lane.b32.xlu0 %v254, 4
      %v536 = vpop.permute.xlu0 %535
      %593 = vrot.lane.b32.xlu0 %v255, 8
      %v594 = vpop.permute.xlu0 %593
      %595 = vrot.lane.b32.xlu0 %v256, 8
      %v596 = vpop.permute.xlu0 %595
      %597 = vrot.lane.b32.xlu0 %v257, 8
      %v598 = vpop.permute.xlu0 %597
      %599 = vrot.lane.b32.xlu0 %v258, 8
      %v600 = vpop.permute.xlu0 %599
      %601 = vrot.lane.b32.xlu0 %v259, 8
      %v602 = vpop.permute.xlu0 %601
      %603 = vrot.lane.b32.xlu0 %v260, 8
      %v604 = vpop.permute.xlu0 %603
      %605 = vrot.lane.b32.xlu0 %v261, 8
      %v606 = vpop.permute.xlu0 %605
      %607 = vrot.lane.b32.xlu0 %v262, 8
      %v608 = vpop.permute.xlu0 %607
      %609 = vrot.lane.b32.xlu0 %v263, 8
      %v610 = vpop.permute.xlu0 %609
      %611 = vrot.lane.b32.xlu0 %v264, 8
      %v612 = vpop.permute.xlu0 %611
      %613 = vrot.lane.b32.xlu0 %v265, 8
      %v614 = vpop.permute.xlu0 %613
      %615 = vrot.lane.b32.xlu0 %v266, 8
      %v616 = vpop.permute.xlu0 %615
      %617 = vrot.lane.b32.xlu0 %v267, 8
      %v618 = vpop.permute.xlu0 %617
      %619 = vrot.lane.b32.xlu0 %v268, 8
      %v620 = vpop.permute.xlu0 %619
      %621 = vrot.lane.b32.xlu0 %v269, 8
      %v622 = vpop.permute.xlu0 %621
      %623 = vrot.lane.b32.xlu0 %v270, 8
      %v624 = vpop.permute.xlu0 %623
      %625 = vrot.lane.b32.xlu0 %v271, 8
      %v626 = vpop.permute.xlu0 %625
      %627 = vrot.lane.b32.xlu0 %v272, 8
      %v628 = vpop.permute.xlu0 %627
      %629 = vrot.lane.b32.xlu0 %v273, 8
      %v630 = vpop.permute.xlu0 %629
      %631 = vrot.lane.b32.xlu0 %v274, 8
      %v632 = vpop.permute.xlu0 %631
      %633 = vrot.lane.b32.xlu0 %v275, 8
      %v634 = vpop.permute.xlu0 %633
      %635 = vrot.lane.b32.xlu0 %v276, 8
      %v636 = vpop.permute.xlu0 %635
      %637 = vrot.lane.b32.xlu0 %v277, 8
      %v638 = vpop.permute.xlu0 %637
      %639 = vrot.lane.b32.xlu0 %v278, 8
      %v640 = vpop.permute.xlu0 %639
      %641 = vrot.lane.b32.xlu0 %v279, 8
      %v642 = vpop.permute.xlu0 %641
      %643 = vrot.lane.b32.xlu0 %v280, 8
      %v644 = vpop.permute.xlu0 %643
      %645 = vrot.lane.b32.xlu0 %v281, 8
      %v646 = vpop.permute.xlu0 %645
      %647 = vrot.lane.b32.xlu0 %v282, 8
      %v648 = vpop.permute.xlu0 %647
      %705 = vrot.lane.b32.xlu0 %v284, 12
      %v706 = vpop.permute.xlu0 %705
      %707 = vrot.lane.b32.xlu0 %v285, 12
      %v708 = vpop.permute.xlu0 %707
      %709 = vrot.lane.b32.xlu0 %v286, 12
      %v710 = vpop.permute.xlu0 %709
      %711 = vrot.lane.b32.xlu0 %v287, 12
      %v712 = vpop.permute.xlu0 %711
      %713 = vrot.lane.b32.xlu0 %v288, 12
      %v714 = vpop.permute.xlu0 %713
      %715 = vrot.lane.b32.xlu0 %v289, 12
      %v716 = vpop.permute.xlu0 %715
      %717 = vrot.lane.b32.xlu0 %v290, 12
      %v718 = vpop.permute.xlu0 %717
      %719 = vrot.lane.b32.xlu0 %v291, 12
      %v720 = vpop.permute.xlu0 %719
      %721 = vrot.lane.b32.xlu0 %v292, 12
      %v722 = vpop.permute.xlu0 %721
      %723 = vrot.lane.b32.xlu0 %v293, 12
      %v724 = vpop.permute.xlu0 %723
      %725 = vrot.lane.b32.xlu0 %v294, 12
      %v726 = vpop.permute.xlu0 %725
      %727 = vrot.lane.b32.xlu0 %v295, 12
      %v728 = vpop.permute.xlu0 %727
      %729 = vrot.lane.b32.xlu0 %v296, 12
      %v730 = vpop.permute.xlu0 %729
      %731 = vrot.lane.b32.xlu0 %v297, 12
      %v732 = vpop.permute.xlu0 %731
      %733 = vrot.lane.b32.xlu0 %v298, 12
      %v734 = vpop.permute.xlu0 %733
      %735 = vrot.lane.b32.xlu0 %v299, 12
      %v736 = vpop.permute.xlu0 %735
      %737 = vrot.lane.b32.xlu0 %v300, 12
      %v738 = vpop.permute.xlu0 %737
      %739 = vrot.lane.b32.xlu0 %v301, 12
      %v740 = vpop.permute.xlu0 %739
      %741 = vrot.lane.b32.xlu0 %v302, 12
      %v742 = vpop.permute.xlu0 %741
      %743 = vrot.lane.b32.xlu0 %v303, 12
      %v744 = vpop.permute.xlu0 %743
      %745 = vrot.lane.b32.xlu0 %v304, 12
      %v746 = vpop.permute.xlu0 %745
      %747 = vrot.lane.b32.xlu0 %v305, 12
      %v748 = vpop.permute.xlu0 %747
      %749 = vrot.lane.b32.xlu0 %v306, 12
      %v750 = vpop.permute.xlu0 %749
      %751 = vrot.lane.b32.xlu0 %v307, 12
      %v752 = vpop.permute.xlu0 %751
      %753 = vrot.lane.b32.xlu0 %v308, 12
      %v754 = vpop.permute.xlu0 %753
      %755 = vrot.lane.b32.xlu0 %v309, 12
      %v756 = vpop.permute.xlu0 %755
      %757 = vrot.lane.b32.xlu0 %v310, 12
      %v758 = vpop.permute.xlu0 %757
      %759 = vrot.lane.b32.xlu0 %v311, 12
      %v760 = vpop.permute.xlu0 %759
      %817 = vrot.lane.b32.xlu0 %v312, 16
      %v818 = vpop.permute.xlu0 %817
      %819 = vrot.lane.b32.xlu0 %v313, 16
      %v820 = vpop.permute.xlu0 %819
      %821 = vrot.lane.b32.xlu0 %v314, 16
      %v822 = vpop.permute.xlu0 %821
      %823 = vrot.lane.b32.xlu0 %v315, 16
      %v824 = vpop.permute.xlu0 %823
      %825 = vrot.lane.b32.xlu0 %v316, 16
      %v826 = vpop.permute.xlu0 %825
      %827 = vrot.lane.b32.xlu0 %v317, 16
      %v828 = vpop.permute.xlu0 %827
      %829 = vrot.lane.b32.xlu0 %v318, 16
      %v830 = vpop.permute.xlu0 %829
      %831 = vrot.lane.b32.xlu0 %v319, 16
      %v832 = vpop.permute.xlu0 %831
      %833 = vrot.lane.b32.xlu0 %v320, 16
      %v834 = vpop.permute.xlu0 %833
      %835 = vrot.lane.b32.xlu0 %v321, 16
      %v836 = vpop.permute.xlu0 %835
      %837 = vrot.lane.b32.xlu0 %v322, 16
      %v838 = vpop.permute.xlu0 %837
      %839 = vrot.lane.b32.xlu0 %v323, 16
      %v840 = vpop.permute.xlu0 %839
      %841 = vrot.lane.b32.xlu0 %v324, 16
      %v842 = vpop.permute.xlu0 %841
      %843 = vrot.lane.b32.xlu0 %v325, 16
      %v844 = vpop.permute.xlu0 %843
      %845 = vrot.lane.b32.xlu0 %v326, 16
      %v846 = vpop.permute.xlu0 %845
      %847 = vrot.lane.b32.xlu0 %v327, 16
      %v848 = vpop.permute.xlu0 %847
      %849 = vrot.lane.b32.xlu0 %v328, 16
      %v850 = vpop.permute.xlu0 %849
      %851 = vrot.lane.b32.xlu0 %v329, 16
      %v852 = vpop.permute.xlu0 %851
      %853 = vrot.lane.b32.xlu0 %v330, 16
      %v854 = vpop.permute.xlu0 %853
      %855 = vrot.lane.b32.xlu0 %v331, 16
      %v856 = vpop.permute.xlu0 %855
      %857 = vrot.lane.b32.xlu0 %v332, 16
      %v858 = vpop.permute.xlu0 %857
      %859 = vrot.lane.b32.xlu0 %v333, 16
      %v860 = vpop.permute.xlu0 %859
      %861 = vrot.lane.b32.xlu0 %v334, 16
      %v862 = vpop.permute.xlu0 %861
      %863 = vrot.lane.b32.xlu0 %v335, 16
      %v864 = vpop.permute.xlu0 %863
      %865 = vrot.lane.b32.xlu0 %v336, 16
      %v866 = vpop.permute.xlu0 %865
      %867 = vrot.lane.b32.xlu0 %v337, 16
      %v868 = vpop.permute.xlu0 %867
      %869 = vrot.lane.b32.xlu0 %v338, 16
      %v870 = vpop.permute.xlu0 %869
      %871 = vrot.lane.b32.xlu0 %v339, 16
      %v872 = vpop.permute.xlu0 %871
      %929 = vrot.lane.b32.xlu0 %v340, 20
      %v930 = vpop.permute.xlu0 %929
      %931 = vrot.lane.b32.xlu0 %v341, 20
      %v932 = vpop.permute.xlu0 %931
      %933 = vrot.lane.b32.xlu0 %v342, 20
      %v934 = vpop.permute.xlu0 %933
      %935 = vrot.lane.b32.xlu0 %v343, 20
      %v936 = vpop.permute.xlu0 %935
      %937 = vrot.lane.b32.xlu0 %v344, 20
      %v938 = vpop.permute.xlu0 %937
      %939 = vrot.lane.b32.xlu0 %v345, 20
      %v940 = vpop.permute.xlu0 %939
      %941 = vrot.lane.b32.xlu0 %v346, 20
      %v942 = vpop.permute.xlu0 %941
      %943 = vrot.lane.b32.xlu0 %v347, 20
      %v944 = vpop.permute.xlu0 %943
      %945 = vrot.lane.b32.xlu0 %v348, 20
      %v946 = vpop.permute.xlu0 %945
      %947 = vrot.lane.b32.xlu0 %v349, 20
      %v948 = vpop.permute.xlu0 %947
      %949 = vrot.lane.b32.xlu0 %v350, 20
      %v950 = vpop.permute.xlu0 %949
      %951 = vrot.lane.b32.xlu0 %v351, 20
      %v952 = vpop.permute.xlu0 %951
      %953 = vrot.lane.b32.xlu0 %v352, 20
      %v954 = vpop.permute.xlu0 %953
      %955 = vrot.lane.b32.xlu0 %v353, 20
      %v956 = vpop.permute.xlu0 %955
      %957 = vrot.lane.b32.xlu0 %v354, 20
      %v958 = vpop.permute.xlu0 %957
      %959 = vrot.lane.b32.xlu0 %v355, 20
      %v960 = vpop.permute.xlu0 %959
      %961 = vrot.lane.b32.xlu0 %v356, 20
      %v962 = vpop.permute.xlu0 %961
      %963 = vrot.lane.b32.xlu0 %v357, 20
      %v964 = vpop.permute.xlu0 %963
      %965 = vrot.lane.b32.xlu0 %v358, 20
      %v966 = vpop.permute.xlu0 %965
      %967 = vrot.lane.b32.xlu0 %v359, 20
      %v968 = vpop.permute.xlu0 %967
      %969 = vrot.lane.b32.xlu0 %v360, 20
      %v970 = vpop.permute.xlu0 %969
      %971 = vrot.lane.b32.xlu0 %v361, 20
      %v972 = vpop.permute.xlu0 %971
      %973 = vrot.lane.b32.xlu0 %v362, 20
      %v974 = vpop.permute.xlu0 %973
      %975 = vrot.lane.b32.xlu0 %v363, 20
      %v976 = vpop.permute.xlu0 %975
      %977 = vrot.lane.b32.xlu0 %v364, 20
      %v978 = vpop.permute.xlu0 %977
      %979 = vrot.lane.b32.xlu0 %v365, 20
      %v980 = vpop.permute.xlu0 %979
      %981 = vrot.lane.b32.xlu0 %v366, 20
      %v982 = vpop.permute.xlu0 %981
      %983 = vrot.lane.b32.xlu0 %v367, 20
      %v984 = vpop.permute.xlu0 %983
      %1041 = vrot.lane.b32.xlu0 %v369, 24
      %v1042 = vpop.permute.xlu0 %1041
      %1043 = vrot.lane.b32.xlu0 %v370, 24
      %v1044 = vpop.permute.xlu0 %1043
      %1045 = vrot.lane.b32.xlu0 %v371, 24
      %v1046 = vpop.permute.xlu0 %1045
      %1047 = vrot.lane.b32.xlu0 %v372, 24
      %v1048 = vpop.permute.xlu0 %1047
      %1049 = vrot.lane.b32.xlu0 %v373, 24
      %v1050 = vpop.permute.xlu0 %1049
      %1051 = vrot.lane.b32.xlu0 %v374, 24
      %v1052 = vpop.permute.xlu0 %1051
      %1053 = vrot.lane.b32.xlu0 %v375, 24
      %v1054 = vpop.permute.xlu0 %1053
      %1055 = vrot.lane.b32.xlu0 %v376, 24
      %v1056 = vpop.permute.xlu0 %1055
      %1057 = vrot.lane.b32.xlu0 %v377, 24
      %v1058 = vpop.permute.xlu0 %1057
      %1059 = vrot.lane.b32.xlu0 %v378, 24
      %v1060 = vpop.permute.xlu0 %1059
      %1061 = vrot.lane.b32.xlu0 %v379, 24
      %v1062 = vpop.permute.xlu0 %1061
      %1063 = vrot.lane.b32.xlu0 %v380, 24
      %v1064 = vpop.permute.xlu0 %1063
      %1065 = vrot.lane.b32.xlu0 %v381, 24
      %v1066 = vpop.permute.xlu0 %1065
      %1067 = vrot.lane.b32.xlu0 %v382, 24
      %v1068 = vpop.permute.xlu0 %1067
      %1069 = vrot.lane.b32.xlu0 %v383, 24
      %v1070 = vpop.permute.xlu0 %1069
      %1071 = vrot.lane.b32.xlu0 %v384, 24
      %v1072 = vpop.permute.xlu0 %1071
      %1073 = vrot.lane.b32.xlu0 %v385, 24
      %v1074 = vpop.permute.xlu0 %1073
      %1075 = vrot.lane.b32.xlu0 %v386, 24
      %v1076 = vpop.permute.xlu0 %1075
      %1077 = vrot.lane.b32.xlu0 %v387, 24
      %v1078 = vpop.permute.xlu0 %1077
      %1079 = vrot.lane.b32.xlu0 %v388, 24
      %v1080 = vpop.permute.xlu0 %1079
      %1081 = vrot.lane.b32.xlu0 %v389, 24
      %v1082 = vpop.permute.xlu0 %1081
      %1083 = vrot.lane.b32.xlu0 %v390, 24
      %v1084 = vpop.permute.xlu0 %1083
      %1085 = vrot.lane.b32.xlu0 %v391, 24
      %v1086 = vpop.permute.xlu0 %1085
      %1087 = vrot.lane.b32.xlu0 %v392, 24
      %v1088 = vpop.permute.xlu0 %1087
      %1089 = vrot.lane.b32.xlu0 %v393, 24
      %v1090 = vpop.permute.xlu0 %1089
      %1091 = vrot.lane.b32.xlu0 %v394, 24
      %v1092 = vpop.permute.xlu0 %1091
      %1093 = vrot.lane.b32.xlu0 %v395, 24
      %v1094 = vpop.permute.xlu0 %1093
      %1095 = vrot.lane.b32.xlu0 %v396, 24
      %v1096 = vpop.permute.xlu0 %1095
      %1153 = vrot.lane.b32.xlu0 %v397, 28
      %v1154 = vpop.permute.xlu0 %1153
      %1155 = vrot.lane.b32.xlu0 %v398, 28
      %v1156 = vpop.permute.xlu0 %1155
      %1157 = vrot.lane.b32.xlu0 %v399, 28
      %v1158 = vpop.permute.xlu0 %1157
      %1159 = vrot.lane.b32.xlu0 %v400, 28
      %v1160 = vpop.permute.xlu0 %1159
      %1161 = vrot.lane.b32.xlu0 %v401, 28
      %v1162 = vpop.permute.xlu0 %1161
      %1163 = vrot.lane.b32.xlu0 %v402, 28
      %v1164 = vpop.permute.xlu0 %1163
      %1165 = vrot.lane.b32.xlu0 %v403, 28
      %v1166 = vpop.permute.xlu0 %1165
      %1167 = vrot.lane.b32.xlu0 %v404, 28
      %v1168 = vpop.permute.xlu0 %1167
      %1169 = vrot.lane.b32.xlu0 %v405, 28
      %v1170 = vpop.permute.xlu0 %1169
      %1171 = vrot.lane.b32.xlu0 %v406, 28
      %v1172 = vpop.permute.xlu0 %1171
      %1173 = vrot.lane.b32.xlu0 %v407, 28
      %v1174 = vpop.permute.xlu0 %1173
      %1175 = vrot.lane.b32.xlu0 %v408, 28
      %v1176 = vpop.permute.xlu0 %1175
      %1177 = vrot.lane.b32.xlu0 %v409, 28
      %v1178 = vpop.permute.xlu0 %1177
      %1179 = vrot.lane.b32.xlu0 %v410, 28
      %v1180 = vpop.permute.xlu0 %1179
      %1181 = vrot.lane.b32.xlu0 %v411, 28
      %v1182 = vpop.permute.xlu0 %1181
      %1183 = vrot.lane.b32.xlu0 %v412, 28
      %v1184 = vpop.permute.xlu0 %1183
      %1185 = vrot.lane.b32.xlu0 %v413, 28
      %v1186 = vpop.permute.xlu0 %1185
      %1187 = vrot.lane.b32.xlu0 %v414, 28
      %v1188 = vpop.permute.xlu0 %1187
      %1189 = vrot.lane.b32.xlu0 %v415, 28
      %v1190 = vpop.permute.xlu0 %1189
      %1191 = vrot.lane.b32.xlu0 %v416, 28
      %v1192 = vpop.permute.xlu0 %1191
      %1193 = vrot.lane.b32.xlu0 %v417, 28
      %v1194 = vpop.permute.xlu0 %1193
      %1195 = vrot.lane.b32.xlu0 %v418, 28
      %v1196 = vpop.permute.xlu0 %1195
      %1197 = vrot.lane.b32.xlu0 %v419, 28
      %v1198 = vpop.permute.xlu0 %1197
      %1199 = vrot.lane.b32.xlu0 %v420, 28
      %v1200 = vpop.permute.xlu0 %1199
      %1201 = vrot.lane.b32.xlu0 %v421, 28
      %v1202 = vpop.permute.xlu0 %1201
      %1203 = vrot.lane.b32.xlu0 %v422, 28
      %v1204 = vpop.permute.xlu0 %1203
      %1205 = vrot.lane.b32.xlu0 %v423, 28
      %v1206 = vpop.permute.xlu0 %1205
      %1207 = vrot.lane.b32.xlu0 %v424, 28
      %v1208 = vpop.permute.xlu0 %1207
      %1265 = vrot.lane.b32.xlu0 %v425, 32
      %v1266 = vpop.permute.xlu0 %1265
      %1267 = vrot.lane.b32.xlu0 %v426, 32
      %v1268 = vpop.permute.xlu0 %1267
      %1269 = vrot.lane.b32.xlu0 %v427, 32
      %v1270 = vpop.permute.xlu0 %1269
      %1271 = vrot.lane.b32.xlu0 %v428, 32
      %v1272 = vpop.permute.xlu0 %1271
      %1273 = vrot.lane.b32.xlu0 %v429, 32
      %v1274 = vpop.permute.xlu0 %1273
      %1275 = vrot.lane.b32.xlu0 %v430, 32
      %v1276 = vpop.permute.xlu0 %1275
      %1277 = vrot.lane.b32.xlu0 %v431, 32
      %v1278 = vpop.permute.xlu0 %1277
      %1279 = vrot.lane.b32.xlu0 %v432, 32
      %v1280 = vpop.permute.xlu0 %1279
      %1281 = vrot.lane.b32.xlu0 %v433, 32
      %v1282 = vpop.permute.xlu0 %1281
      %1283 = vrot.lane.b32.xlu0 %v434, 32
      %v1284 = vpop.permute.xlu0 %1283
      %1285 = vrot.lane.b32.xlu0 %v435, 32
      %v1286 = vpop.permute.xlu0 %1285
      %1287 = vrot.lane.b32.xlu0 %v436, 32
      %v1288 = vpop.permute.xlu0 %1287
      %1289 = vrot.lane.b32.xlu0 %v437, 32
      %v1290 = vpop.permute.xlu0 %1289
      %1291 = vrot.lane.b32.xlu0 %v438, 32
      %v1292 = vpop.permute.xlu0 %1291
      %1293 = vrot.lane.b32.xlu0 %v439, 32
      %v1294 = vpop.permute.xlu0 %1293
      %1295 = vrot.lane.b32.xlu0 %v440, 32
      %v1296 = vpop.permute.xlu0 %1295
      %1297 = vrot.lane.b32.xlu0 %v441, 32
      %v1298 = vpop.permute.xlu0 %1297
      %1299 = vrot.lane.b32.xlu0 %v442, 32
      %v1300 = vpop.permute.xlu0 %1299
      %1301 = vrot.lane.b32.xlu0 %v443, 32
      %v1302 = vpop.permute.xlu0 %1301
      %1303 = vrot.lane.b32.xlu0 %v444, 32
      %v1304 = vpop.permute.xlu0 %1303
      %1305 = vrot.lane.b32.xlu0 %v445, 32
      %v1306 = vpop.permute.xlu0 %1305
      %1307 = vrot.lane.b32.xlu0 %v446, 32
      %v1308 = vpop.permute.xlu0 %1307
      %1309 = vrot.lane.b32.xlu0 %v447, 32
      %v1310 = vpop.permute.xlu0 %1309
      %1311 = vrot.lane.b32.xlu0 %v448, 32
      %v1312 = vpop.permute.xlu0 %1311
      %1313 = vrot.lane.b32.xlu0 %v449, 32
      %v1314 = vpop.permute.xlu0 %1313
      %1315 = vrot.lane.b32.xlu0 %v450, 32
      %v1316 = vpop.permute.xlu0 %1315
      %1317 = vrot.lane.b32.xlu0 %v451, 32
      %v1318 = vpop.permute.xlu0 %1317
      %1319 = vrot.lane.b32.xlu0 %v452, 32
      %v1320 = vpop.permute.xlu0 %1319
      %vm1349 = vcmask 31744
      %v1350 = vsel %vm1349, %v199, %v482
      %v1351 = vsel %vm1349, %v200, %v484
      %v1352 = vsel %vm1349, %v201, %v486
      %v1353 = vsel %vm1349, %v202, %v488
      %v1354 = vsel %vm1349, %v203, %v490
      %v1355 = vsel %vm1349, %v204, %v492
      %v1356 = vsel %vm1349, %v205, %v494
      %v1357 = vsel %vm1349, %v206, %v496
      %v1358 = vsel %vm1349, %v207, %v498
      %v1359 = vsel %vm1349, %v208, %v500
      %v1360 = vsel %vm1349, %v209, %v502
      %v1361 = vsel %vm1349, %v210, %v504
      %v1362 = vsel %vm1349, %v211, %v506
      %v1363 = vsel %vm1349, %v212, %v508
      %v1364 = vsel %vm1349, %v213, %v510
      %v1365 = vsel %vm1349, %v214, %v512
      %v1366 = vsel %vm1349, %v215, %v514
      %v1367 = vsel %vm1349, %v216, %v516
      %v1368 = vsel %vm1349, %v217, %v518
      %v1369 = vsel %vm1349, %v218, %v520
      %v1370 = vsel %vm1349, %v219, %v522
      %v1371 = vsel %vm1349, %v220, %v524
      %v1372 = vsel %vm1349, %v221, %v526
      %v1373 = vsel %vm1349, %v222, %v528
      %v1374 = vsel %vm1349, %v223, %v530
      %v1375 = vsel %vm1349, %v224, %v532
      %v1376 = vsel %vm1349, %v225, %v534
      %v1377 = vsel %vm1349, %v226, %v536
      %vm1378 = vcmask 64512
      %v1379 = vsel %vm1378, %v1350, %v594
      %v1380 = vsel %vm1378, %v1351, %v596
      %v1381 = vsel %vm1378, %v1352, %v598
      %v1382 = vsel %vm1378, %v1353, %v600
      %v1383 = vsel %vm1378, %v1354, %v602
      %v1384 = vsel %vm1378, %v1355, %v604
      %v1385 = vsel %vm1378, %v1356, %v606
      %v1386 = vsel %vm1378, %v1357, %v608
      %v1387 = vsel %vm1378, %v1358, %v610
      %v1388 = vsel %vm1378, %v1359, %v612
      %v1389 = vsel %vm1378, %v1360, %v614
      %v1390 = vsel %vm1378, %v1361, %v616
      %v1391 = vsel %vm1378, %v1362, %v618
      %v1392 = vsel %vm1378, %v1363, %v620
      %v1393 = vsel %vm1378, %v1364, %v622
      %v1394 = vsel %vm1378, %v1365, %v624
      %v1395 = vsel %vm1378, %v1366, %v626
      %v1396 = vsel %vm1378, %v1367, %v628
      %v1397 = vsel %vm1378, %v1368, %v630
      %v1398 = vsel %vm1378, %v1369, %v632
      %v1399 = vsel %vm1378, %v1370, %v634
      %v1400 = vsel %vm1378, %v1371, %v636
      %v1401 = vsel %vm1378, %v1372, %v638
      %v1402 = vsel %vm1378, %v1373, %v640
      %v1403 = vsel %vm1378, %v1374, %v642
      %v1404 = vsel %vm1378, %v1375, %v644
      %v1405 = vsel %vm1378, %v1376, %v646
      %v1406 = vsel %vm1378, %v1377, %v648
      %vm1407 = vcmask 97280
      %v1408 = vsel %vm1407, %v1379, %v706
      %v1409 = vsel %vm1407, %v1380, %v708
      %v1410 = vsel %vm1407, %v1381, %v710
      %v1411 = vsel %vm1407, %v1382, %v712
      %v1412 = vsel %vm1407, %v1383, %v714
      %v1413 = vsel %vm1407, %v1384, %v716
      %v1414 = vsel %vm1407, %v1385, %v718
      %v1415 = vsel %vm1407, %v1386, %v720
      %v1416 = vsel %vm1407, %v1387, %v722
      %v1417 = vsel %vm1407, %v1388, %v724
      %v1418 = vsel %vm1407, %v1389, %v726
      %v1419 = vsel %vm1407, %v1390, %v728
      %v1420 = vsel %vm1407, %v1391, %v730
      %v1421 = vsel %vm1407, %v1392, %v732
      %v1422 = vsel %vm1407, %v1393, %v734
      %v1423 = vsel %vm1407, %v1394, %v736
      %v1424 = vsel %vm1407, %v1395, %v738
      %v1425 = vsel %vm1407, %v1396, %v740
      %v1426 = vsel %vm1407, %v1397, %v742
      %v1427 = vsel %vm1407, %v1398, %v744
      %v1428 = vsel %vm1407, %v1399, %v746
      %v1429 = vsel %vm1407, %v1400, %v748
      %v1430 = vsel %vm1407, %v1401, %v750
      %v1431 = vsel %vm1407, %v1402, %v752
      %v1432 = vsel %vm1407, %v1403, %v754
      %v1433 = vsel %vm1407, %v1404, %v756
      %v1434 = vsel %vm1407, %v1405, %v758
      %v1435 = vsel %vm1407, %v1406, %v760
      %vm1436 = vcmask 130048
      %v1437 = vsel %vm1436, %v1408, %v818
      %v1438 = vsel %vm1436, %v1409, %v820
      %v1439 = vsel %vm1436, %v1410, %v822
      %v1440 = vsel %vm1436, %v1411, %v824
      %v1441 = vsel %vm1436, %v1412, %v826
      %v1442 = vsel %vm1436, %v1413, %v828
      %v1443 = vsel %vm1436, %v1414, %v830
      %v1444 = vsel %vm1436, %v1415, %v832
      %v1445 = vsel %vm1436, %v1416, %v834
      %v1446 = vsel %vm1436, %v1417, %v836
      %v1447 = vsel %vm1436, %v1418, %v838
      %v1448 = vsel %vm1436, %v1419, %v840
      %v1449 = vsel %vm1436, %v1420, %v842
      %v1450 = vsel %vm1436, %v1421, %v844
      %v1451 = vsel %vm1436, %v1422, %v846
      %v1452 = vsel %vm1436, %v1423, %v848
      %v1453 = vsel %vm1436, %v1424, %v850
      %v1454 = vsel %vm1436, %v1425, %v852
      %v1455 = vsel %vm1436, %v1426, %v854
      %v1456 = vsel %vm1436, %v1427, %v856
      %v1457 = vsel %vm1436, %v1428, %v858
      %v1458 = vsel %vm1436, %v1429, %v860
      %v1459 = vsel %vm1436, %v1430, %v862
      %v1460 = vsel %vm1436, %v1431, %v864
      %v1461 = vsel %vm1436, %v1432, %v866
      %v1462 = vsel %vm1436, %v1433, %v868
      %v1463 = vsel %vm1436, %v1434, %v870
      %v1464 = vsel %vm1436, %v1435, %v872
      %vm1465 = vcmask 162816
      %v1466 = vsel %vm1465, %v1437, %v930
      %v1467 = vsel %vm1465, %v1438, %v932
      %v1468 = vsel %vm1465, %v1439, %v934
      %v1469 = vsel %vm1465, %v1440, %v936
      %v1470 = vsel %vm1465, %v1441, %v938
      %v1471 = vsel %vm1465, %v1442, %v940
      %v1472 = vsel %vm1465, %v1443, %v942
      %v1473 = vsel %vm1465, %v1444, %v944
      %v1474 = vsel %vm1465, %v1445, %v946
      %v1475 = vsel %vm1465, %v1446, %v948
      %v1476 = vsel %vm1465, %v1447, %v950
      %v1477 = vsel %vm1465, %v1448, %v952
      %v1478 = vsel %vm1465, %v1449, %v954
      %v1479 = vsel %vm1465, %v1450, %v956
      %v1480 = vsel %vm1465, %v1451, %v958
      %v1481 = vsel %vm1465, %v1452, %v960
      %v1482 = vsel %vm1465, %v1453, %v962
      %v1483 = vsel %vm1465, %v1454, %v964
      %v1484 = vsel %vm1465, %v1455, %v966
      %v1485 = vsel %vm1465, %v1456, %v968
      %v1486 = vsel %vm1465, %v1457, %v970
      %v1487 = vsel %vm1465, %v1458, %v972
      %v1488 = vsel %vm1465, %v1459, %v974
      %v1489 = vsel %vm1465, %v1460, %v976
      %v1490 = vsel %vm1465, %v1461, %v978
      %v1491 = vsel %vm1465, %v1462, %v980
      %v1492 = vsel %vm1465, %v1463, %v982
      %v1493 = vsel %vm1465, %v1464, %v984
      %vm1494 = vcmask 195584
      %v1495 = vsel %vm1494, %v1466, %v1042
      %v1496 = vsel %vm1494, %v1467, %v1044
      %v1497 = vsel %vm1494, %v1468, %v1046
      %v1498 = vsel %vm1494, %v1469, %v1048
      %v1499 = vsel %vm1494, %v1470, %v1050
      %v1500 = vsel %vm1494, %v1471, %v1052
      %v1501 = vsel %vm1494, %v1472, %v1054
      %v1502 = vsel %vm1494, %v1473, %v1056
      %v1503 = vsel %vm1494, %v1474, %v1058
      %v1504 = vsel %vm1494, %v1475, %v1060
      %v1505 = vsel %vm1494, %v1476, %v1062
      %v1506 = vsel %vm1494, %v1477, %v1064
      %v1507 = vsel %vm1494, %v1478, %v1066
      %v1508 = vsel %vm1494, %v1479, %v1068
      %v1509 = vsel %vm1494, %v1480, %v1070
      %v1510 = vsel %vm1494, %v1481, %v1072
      %v1511 = vsel %vm1494, %v1482, %v1074
      %v1512 = vsel %vm1494, %v1483, %v1076
      %v1513 = vsel %vm1494, %v1484, %v1078
      %v1514 = vsel %vm1494, %v1485, %v1080
      %v1515 = vsel %vm1494, %v1486, %v1082
      %v1516 = vsel %vm1494, %v1487, %v1084
      %v1517 = vsel %vm1494, %v1488, %v1086
      %v1518 = vsel %vm1494, %v1489, %v1088
      %v1519 = vsel %vm1494, %v1490, %v1090
      %v1520 = vsel %vm1494, %v1491, %v1092
      %v1521 = vsel %vm1494, %v1492, %v1094
      %v1522 = vsel %vm1494, %v1493, %v1096
      %vm1523 = vcmask 228352
      %v1524 = vsel %vm1523, %v1495, %v1154
      %v1525 = vsel %vm1523, %v1496, %v1156
      %v1526 = vsel %vm1523, %v1497, %v1158
      %v1527 = vsel %vm1523, %v1498, %v1160
      %v1528 = vsel %vm1523, %v1499, %v1162
      %v1529 = vsel %vm1523, %v1500, %v1164
      %v1530 = vsel %vm1523, %v1501, %v1166
      %v1531 = vsel %vm1523, %v1502, %v1168
      %v1532 = vsel %vm1523, %v1503, %v1170
      %v1533 = vsel %vm1523, %v1504, %v1172
      %v1534 = vsel %vm1523, %v1505, %v1174
      %v1535 = vsel %vm1523, %v1506, %v1176
      %v1536 = vsel %vm1523, %v1507, %v1178
      %v1537 = vsel %vm1523, %v1508, %v1180
      %v1538 = vsel %vm1523, %v1509, %v1182
      %v1539 = vsel %vm1523, %v1510, %v1184
      %v1540 = vsel %vm1523, %v1511, %v1186
      %v1541 = vsel %vm1523, %v1512, %v1188
      %v1542 = vsel %vm1523, %v1513, %v1190
      %v1543 = vsel %vm1523, %v1514, %v1192
      %v1544 = vsel %vm1523, %v1515, %v1194
      %v1545 = vsel %vm1523, %v1516, %v1196
      %v1546 = vsel %vm1523, %v1517, %v1198
      %v1547 = vsel %vm1523, %v1518, %v1200
      %v1548 = vsel %vm1523, %v1519, %v1202
      %v1549 = vsel %vm1523, %v1520, %v1204
      %v1550 = vsel %vm1523, %v1521, %v1206
      %v1551 = vsel %vm1523, %v1522, %v1208
      %vm1552 = vcmask 261120
      %v1553 = vsel %vm1552, %v1524, %v1266
      %v1554 = vsel %vm1552, %v1525, %v1268
      %v1555 = vsel %vm1552, %v1526, %v1270
      %v1556 = vsel %vm1552, %v1527, %v1272
      %v1557 = vsel %vm1552, %v1528, %v1274
      %v1558 = vsel %vm1552, %v1529, %v1276
      %v1559 = vsel %vm1552, %v1530, %v1278
      %v1560 = vsel %vm1552, %v1531, %v1280
      %v1561 = vsel %vm1552, %v1532, %v1282
      %v1562 = vsel %vm1552, %v1533, %v1284
      %v1563 = vsel %vm1552, %v1534, %v1286
      %v1564 = vsel %vm1552, %v1535, %v1288
      %v1565 = vsel %vm1552, %v1536, %v1290
      %v1566 = vsel %vm1552, %v1537, %v1292
      %v1567 = vsel %vm1552, %v1538, %v1294
      %v1568 = vsel %vm1552, %v1539, %v1296
      %v1569 = vsel %vm1552, %v1540, %v1298
      %v1570 = vsel %vm1552, %v1541, %v1300
      %v1571 = vsel %vm1552, %v1542, %v1302
      %v1572 = vsel %vm1552, %v1543, %v1304
      %v1573 = vsel %vm1552, %v1544, %v1306
      %v1574 = vsel %vm1552, %v1545, %v1308
      %v1575 = vsel %vm1552, %v1546, %v1310
      %v1576 = vsel %vm1552, %v1547, %v1312
      %v1577 = vsel %vm1552, %v1548, %v1314
      %v1578 = vsel %vm1552, %v1549, %v1316
      %v1579 = vsel %vm1552, %v1550, %v1318
      %v1580 = vsel %vm1552, %v1551, %v1320
      %v1581 = vpack.c.bf16 %v1553, %v1553
      %v1582 = vpack.c.bf16 %v1554, %v1554
      %v1583 = vpack.c.bf16 %v1555, %v1555
      %v1584 = vpack.c.bf16 %v1556, %v1556
      %v1585 = vpack.c.bf16 %v1557, %v1557
      %v1586 = vpack.c.bf16 %v1558, %v1558
      %v1587 = vpack.c.bf16 %v1559, %v1559
      %v1588 = vpack.c.bf16 %v1560, %v1560
      %v1589 = vpack.c.bf16 %v1561, %v1561
      %v1590 = vpack.c.bf16 %v1562, %v1562
      %v1591 = vpack.c.bf16 %v1563, %v1563
      %v1592 = vpack.c.bf16 %v1564, %v1564
      %v1593 = vpack.c.bf16 %v1565, %v1565
      %v1594 = vpack.c.bf16 %v1566, %v1566
      %v1595 = vpack.c.bf16 %v1567, %v1567
      %v1596 = vpack.c.bf16 %v1568, %v1568
      %v1597 = vpack.c.bf16 %v1569, %v1569
      %v1598 = vpack.c.bf16 %v1570, %v1570
      %v1599 = vpack.c.bf16 %v1571, %v1571
      %v1600 = vpack.c.bf16 %v1572, %v1572
      %v1601 = vpack.c.bf16 %v1573, %v1573
      %v1602 = vpack.c.bf16 %v1574, %v1574
      %v1603 = vpack.c.bf16 %v1575, %v1575
      %v1604 = vpack.c.bf16 %v1576, %v1576
      %v1605 = vpack.c.bf16 %v1577, %v1577
      %v1606 = vpack.c.bf16 %v1578, %v1578
      %v1607 = vpack.c.bf16 %v1579, %v1579
      %v1608 = vpack.c.bf16 %v1580, %v1580
      %v1609 = vld [vmem:[%s1] sm:$0xff]
      %v1610 = vld [vmem:[%s1 + $0x8] sm:$0xff]
      %v1611 = vld [vmem:[%s1 + $0x10] sm:$0xff]
      %v1612 = vld [vmem:[%s1 + $0x18] sm:$0xff]
      %v1613 = vld [vmem:[%s1 + $0x20] sm:$0xf]
      %v1614 = vpack.c.bf16 %v1610, %v1609
      %v1615 = vpack.c.bf16 %v1612, %v1611
      %v1616 = vpack.c.bf16 %v1613, %v1613
      %v1645 = vrot.slane %v1581, 3
      %v1646 = vrot.slane %v1582, 3
      %v1647 = vrot.slane %v1583, 3
      %v1648 = vrot.slane %v1584, 3
      %v1649 = vrot.slane %v1585, 3
      %v1650 = vrot.slane %v1586, 3
      %v1651 = vrot.slane %v1587, 3
      %v1652 = vrot.slane %v1588, 3
      %v1653 = vrot.slane %v1589, 3
      %v1654 = vrot.slane %v1590, 3
      %v1655 = vrot.slane %v1591, 3
      %v1656 = vrot.slane %v1592, 3
      %v1657 = vrot.slane %v1593, 3
      %v1658 = vrot.slane %v1594, 3
      %v1659 = vrot.slane %v1595, 3
      %v1660 = vrot.slane %v1596, 3
      %v1661 = vrot.slane %v1597, 3
      %v1662 = vrot.slane %v1598, 3
      %v1663 = vrot.slane %v1599, 3
      %v1664 = vrot.slane %v1600, 3
      %v1665 = vrot.slane %v1601, 3
      %v1666 = vrot.slane %v1602, 3
      %v1667 = vrot.slane %v1603, 3
      %v1668 = vrot.slane %v1604, 3
      %v1669 = vrot.slane %v1605, 3
      %v1670 = vrot.slane %v1606, 3
      %v1671 = vrot.slane %v1607, 3
      %v1672 = vrot.slane %v1608, 3
      %vm1673 = vcmask 1040384
      %v1676 = vsel %vm1673, %v1581, %v1645
      %vm1677 = vcmask 1041409
      %v1678 = vsel %vm1677, %v1581, %v1645
      %v1680 = vrot.slane %v1678, 1
      %vm1681 = vcmask 1042434
      %v1682 = vsel %vm1681, %v1581, %v1645
      %v1684 = vrot.slane %v1682, 2
      %vm1685 = vcmask 1043459
      %v1686 = vsel %vm1685, %v1581, %v1645
      %v1688 = vrot.slane %v1686, 3
      %v1691 = vsel %vm1673, %v1582, %v1646
      %v1692 = vsel %vm1677, %v1582, %v1646
      %v1694 = vrot.slane %v1692, 1
      %v1695 = vsel %vm1681, %v1582, %v1646
      %v1697 = vrot.slane %v1695, 2
      %v1700 = vsel %vm1673, %v1583, %v1647
      %v1701 = vsel %vm1677, %v1583, %v1647
      %v1703 = vrot.slane %v1701, 1
      %v1704 = vsel %vm1681, %v1583, %v1647
      %v1706 = vrot.slane %v1704, 2
      %v1707 = vsel %vm1685, %v1583, %v1647
      %v1709 = vrot.slane %v1707, 3
      %v1712 = vsel %vm1673, %v1584, %v1648
      %v1713 = vsel %vm1677, %v1584, %v1648
      %v1715 = vrot.slane %v1713, 1
      %v1716 = vsel %vm1681, %v1584, %v1648
      %v1718 = vrot.slane %v1716, 2
      %v1721 = vsel %vm1673, %v1585, %v1649
      %v1722 = vsel %vm1677, %v1585, %v1649
      %v1724 = vrot.slane %v1722, 1
      %v1725 = vsel %vm1681, %v1585, %v1649
      %v1727 = vrot.slane %v1725, 2
      %v1728 = vsel %vm1685, %v1585, %v1649
      %v1730 = vrot.slane %v1728, 3
      %v1733 = vsel %vm1673, %v1586, %v1650
      %v1734 = vsel %vm1677, %v1586, %v1650
      %v1736 = vrot.slane %v1734, 1
      %v1737 = vsel %vm1681, %v1586, %v1650
      %v1739 = vrot.slane %v1737, 2
      %v1742 = vsel %vm1673, %v1587, %v1651
      %v1743 = vsel %vm1677, %v1587, %v1651
      %v1745 = vrot.slane %v1743, 1
      %v1746 = vsel %vm1681, %v1587, %v1651
      %v1748 = vrot.slane %v1746, 2
      %v1749 = vsel %vm1685, %v1587, %v1651
      %v1751 = vrot.slane %v1749, 3
      %v1754 = vsel %vm1673, %v1588, %v1652
      %v1755 = vsel %vm1677, %v1588, %v1652
      %v1757 = vrot.slane %v1755, 1
      %v1758 = vsel %vm1681, %v1588, %v1652
      %v1760 = vrot.slane %v1758, 2
      %v1763 = vsel %vm1673, %v1589, %v1653
      %v1764 = vsel %vm1677, %v1589, %v1653
      %v1766 = vrot.slane %v1764, 1
      %v1767 = vsel %vm1681, %v1589, %v1653
      %v1769 = vrot.slane %v1767, 2
      %v1770 = vsel %vm1685, %v1589, %v1653
      %v1772 = vrot.slane %v1770, 3
      %v1775 = vsel %vm1673, %v1590, %v1654
      %v1776 = vsel %vm1677, %v1590, %v1654
      %v1778 = vrot.slane %v1776, 1
      %v1779 = vsel %vm1681, %v1590, %v1654
      %v1781 = vrot.slane %v1779, 2
      %v1784 = vsel %vm1673, %v1591, %v1655
      %v1785 = vsel %vm1677, %v1591, %v1655
      %v1787 = vrot.slane %v1785, 1
      %v1788 = vsel %vm1681, %v1591, %v1655
      %v1790 = vrot.slane %v1788, 2
      %v1791 = vsel %vm1685, %v1591, %v1655
      %v1793 = vrot.slane %v1791, 3
      %v1796 = vsel %vm1673, %v1592, %v1656
      %v1797 = vsel %vm1677, %v1592, %v1656
      %v1799 = vrot.slane %v1797, 1
      %v1800 = vsel %vm1681, %v1592, %v1656
      %v1802 = vrot.slane %v1800, 2
      %v1805 = vsel %vm1673, %v1593, %v1657
      %v1806 = vsel %vm1677, %v1593, %v1657
      %v1808 = vrot.slane %v1806, 1
      %v1809 = vsel %vm1681, %v1593, %v1657
      %v1811 = vrot.slane %v1809, 2
      %v1812 = vsel %vm1685, %v1593, %v1657
      %v1814 = vrot.slane %v1812, 3
      %v1817 = vsel %vm1673, %v1594, %v1658
      %v1818 = vsel %vm1677, %v1594, %v1658
      %v1820 = vrot.slane %v1818, 1
      %v1821 = vsel %vm1681, %v1594, %v1658
      %v1823 = vrot.slane %v1821, 2
      %v1826 = vsel %vm1673, %v1595, %v1659
      %v1827 = vsel %vm1677, %v1595, %v1659
      %v1829 = vrot.slane %v1827, 1
      %v1830 = vsel %vm1681, %v1595, %v1659
      %v1832 = vrot.slane %v1830, 2
      %v1833 = vsel %vm1685, %v1595, %v1659
      %v1835 = vrot.slane %v1833, 3
      %v1838 = vsel %vm1673, %v1596, %v1660
      %v1839 = vsel %vm1677, %v1596, %v1660
      %v1841 = vrot.slane %v1839, 1
      %v1842 = vsel %vm1681, %v1596, %v1660
      %v1844 = vrot.slane %v1842, 2
      %v1847 = vsel %vm1673, %v1597, %v1661
      %v1848 = vsel %vm1677, %v1597, %v1661
      %v1850 = vrot.slane %v1848, 1
      %v1851 = vsel %vm1681, %v1597, %v1661
      %v1853 = vrot.slane %v1851, 2
      %v1854 = vsel %vm1685, %v1597, %v1661
      %v1856 = vrot.slane %v1854, 3
      %v1859 = vsel %vm1673, %v1598, %v1662
      %v1860 = vsel %vm1677, %v1598, %v1662
      %v1862 = vrot.slane %v1860, 1
      %v1863 = vsel %vm1681, %v1598, %v1662
      %v1865 = vrot.slane %v1863, 2
      %v1868 = vsel %vm1673, %v1599, %v1663
      %v1869 = vsel %vm1677, %v1599, %v1663
      %v1871 = vrot.slane %v1869, 1
      %v1872 = vsel %vm1681, %v1599, %v1663
      %v1874 = vrot.slane %v1872, 2
      %v1875 = vsel %vm1685, %v1599, %v1663
      %v1877 = vrot.slane %v1875, 3
      %v1880 = vsel %vm1673, %v1600, %v1664
      %v1881 = vsel %vm1677, %v1600, %v1664
      %v1883 = vrot.slane %v1881, 1
      %v1884 = vsel %vm1681, %v1600, %v1664
      %v1886 = vrot.slane %v1884, 2
      %v1889 = vsel %vm1673, %v1601, %v1665
      %v1890 = vsel %vm1677, %v1601, %v1665
      %v1892 = vrot.slane %v1890, 1
      %v1893 = vsel %vm1681, %v1601, %v1665
      %v1895 = vrot.slane %v1893, 2
      %v1896 = vsel %vm1685, %v1601, %v1665
      %v1898 = vrot.slane %v1896, 3
      %v1901 = vsel %vm1673, %v1602, %v1666
      %v1902 = vsel %vm1677, %v1602, %v1666
      %v1904 = vrot.slane %v1902, 1
      %v1905 = vsel %vm1681, %v1602, %v1666
      %v1907 = vrot.slane %v1905, 2
      %v1910 = vsel %vm1673, %v1603, %v1667
      %v1911 = vsel %vm1677, %v1603, %v1667
      %v1913 = vrot.slane %v1911, 1
      %v1914 = vsel %vm1681, %v1603, %v1667
      %v1916 = vrot.slane %v1914, 2
      %v1917 = vsel %vm1685, %v1603, %v1667
      %v1919 = vrot.slane %v1917, 3
      %v1922 = vsel %vm1673, %v1604, %v1668
      %v1923 = vsel %vm1677, %v1604, %v1668
      %v1925 = vrot.slane %v1923, 1
      %v1926 = vsel %vm1681, %v1604, %v1668
      %v1928 = vrot.slane %v1926, 2
      %v1931 = vsel %vm1673, %v1605, %v1669
      %v1932 = vsel %vm1677, %v1605, %v1669
      %v1934 = vrot.slane %v1932, 1
      %v1935 = vsel %vm1681, %v1605, %v1669
      %v1937 = vrot.slane %v1935, 2
      %v1938 = vsel %vm1685, %v1605, %v1669
      %v1940 = vrot.slane %v1938, 3
      %v1943 = vsel %vm1673, %v1606, %v1670
      %v1944 = vsel %vm1677, %v1606, %v1670
      %v1946 = vrot.slane %v1944, 1
      %v1947 = vsel %vm1681, %v1606, %v1670
      %v1949 = vrot.slane %v1947, 2
      %v1952 = vsel %vm1673, %v1607, %v1671
      %v1953 = vsel %vm1677, %v1607, %v1671
      %v1955 = vrot.slane %v1953, 1
      %v1956 = vsel %vm1681, %v1607, %v1671
      %v1958 = vrot.slane %v1956, 2
      %v1959 = vsel %vm1685, %v1607, %v1671
      %v1961 = vrot.slane %v1959, 3
      %v1964 = vsel %vm1673, %v1608, %v1672
      %v1965 = vsel %vm1677, %v1608, %v1672
      %v1967 = vrot.slane %v1965, 1
      %v1968 = vsel %vm1681, %v1608, %v1672
      %v1970 = vrot.slane %v1968, 2
      %1971 = vst [vmem:[#allocation1] ss:$9 sm:$0xff] %v1676
      %s1973 = scalar_lea.vmem [#allocation1], 1
      %1974 = vst [vmem:[%s1973] ss:$9 sm:$0xff] %v1680
      %s1976 = scalar_lea.vmem [#allocation1], 2
      %1977 = vst [vmem:[%s1976] ss:$9 sm:$0xff] %v1684
      %s1979 = scalar_lea.vmem [#allocation1], 3
      %1980 = vst [vmem:[%s1979] ss:$9 sm:$0xff] %v1688
      %s1981 = scalar_lea.vmem [#allocation1], 4
      %1982 = vst [vmem:[%s1981] ss:$9 sm:$0xff] %v1691
      %s1984 = scalar_lea.vmem [#allocation1], 5
      %1985 = vst [vmem:[%s1984] ss:$9 sm:$0xff] %v1694
      %s1987 = scalar_lea.vmem [#allocation1], 6
      %1988 = vst [vmem:[%s1987] ss:$9 sm:$0xff] %v1697
      %s1989 = scalar_lea.vmem [#allocation1], 7
      %1990 = vst [vmem:[%s1989] ss:$9 sm:$0xff] %v1700
      %v1991 = vld [vmem:[#allocation1] sm:$0xff]
      %1993 = vst [vmem:[#allocation1] ss:$9 sm:$0xff] %v1703
      %1995 = vst [vmem:[%s1973] ss:$9 sm:$0xff] %v1706
      %1997 = vst [vmem:[%s1976] ss:$9 sm:$0xff] %v1709
      %1998 = vst [vmem:[%s1979] ss:$9 sm:$0xff] %v1712
      %2000 = vst [vmem:[%s1981] ss:$9 sm:$0xff] %v1715
      %2002 = vst [vmem:[%s1984] ss:$9 sm:$0xff] %v1718
      %2003 = vst [vmem:[%s1987] ss:$9 sm:$0xff] %v1721
      %2005 = vst [vmem:[%s1989] ss:$9 sm:$0xff] %v1724
      %v2006 = vld [vmem:[#allocation1] sm:$0xff]
      %2008 = vst [vmem:[#allocation1] ss:$9 sm:$0xff] %v1727
      %2010 = vst [vmem:[%s1973] ss:$9 sm:$0xff] %v1730
      %2011 = vst [vmem:[%s1976] ss:$9 sm:$0xff] %v1733
      %2013 = vst [vmem:[%s1979] ss:$9 sm:$0xff] %v1736
      %2015 = vst [vmem:[%s1981] ss:$9 sm:$0xff] %v1739
      %2016 = vst [vmem:[%s1984] ss:$9 sm:$0xff] %v1742
      %2018 = vst [vmem:[%s1987] ss:$9 sm:$0xff] %v1745
      %2020 = vst [vmem:[%s1989] ss:$9 sm:$0xff] %v1748
      %v2021 = vld [vmem:[#allocation1] sm:$0xff]
      %2023 = vst [vmem:[#allocation1] ss:$9 sm:$0xff] %v1751
      %2024 = vst [vmem:[%s1973] ss:$9 sm:$0xff] %v1754
      %2026 = vst [vmem:[%s1976] ss:$9 sm:$0xff] %v1757
      %2028 = vst [vmem:[%s1979] ss:$9 sm:$0xff] %v1760
      %2029 = vst [vmem:[%s1981] ss:$9 sm:$0xff] %v1763
      %2031 = vst [vmem:[%s1984] ss:$9 sm:$0xff] %v1766
      %2033 = vst [vmem:[%s1987] ss:$9 sm:$0xff] %v1769
      %2035 = vst [vmem:[%s1989] ss:$9 sm:$0xff] %v1772
      %v2036 = vld [vmem:[#allocation1] sm:$0xff]
      %2037 = vst [vmem:[#allocation1] ss:$9 sm:$0xff] %v1775
      %2039 = vst [vmem:[%s1973] ss:$9 sm:$0xff] %v1778
      %2041 = vst [vmem:[%s1976] ss:$9 sm:$0xff] %v1781
      %2042 = vst [vmem:[%s1979] ss:$9 sm:$0xff] %v1784
      %2044 = vst [vmem:[%s1981] ss:$9 sm:$0xff] %v1787
      %2046 = vst [vmem:[%s1984] ss:$9 sm:$0xff] %v1790
      %2048 = vst [vmem:[%s1987] ss:$9 sm:$0xff] %v1793
      %2049 = vst [vmem:[%s1989] ss:$9 sm:$0xff] %v1796
      %v2050 = vld [vmem:[#allocation1] sm:$0xff]
      %2052 = vst [vmem:[#allocation1] ss:$9 sm:$0xff] %v1799
      %2054 = vst [vmem:[%s1973] ss:$9 sm:$0xff] %v1802
      %2055 = vst [vmem:[%s1976] ss:$9 sm:$0xff] %v1805
      %2057 = vst [vmem:[%s1979] ss:$9 sm:$0xff] %v1808
      %2059 = vst [vmem:[%s1981] ss:$9 sm:$0xff] %v1811
      %2061 = vst [vmem:[%s1984] ss:$9 sm:$0xff] %v1814
      %2062 = vst [vmem:[%s1987] ss:$9 sm:$0xff] %v1817
      %2064 = vst [vmem:[%s1989] ss:$9 sm:$0xff] %v1820
      %v2065 = vld [vmem:[#allocation1] sm:$0xff]
      %2067 = vst [vmem:[#allocation1] ss:$9 sm:$0xff] %v1823
      %2068 = vst [vmem:[%s1973] ss:$9 sm:$0xff] %v1826
      %2070 = vst [vmem:[%s1976] ss:$9 sm:$0xff] %v1829
      %2072 = vst [vmem:[%s1979] ss:$9 sm:$0xff] %v1832
      %2074 = vst [vmem:[%s1981] ss:$9 sm:$0xff] %v1835
      %2075 = vst [vmem:[%s1984] ss:$9 sm:$0xff] %v1838
      %2077 = vst [vmem:[%s1987] ss:$9 sm:$0xff] %v1841
      %2079 = vst [vmem:[%s1989] ss:$9 sm:$0xff] %v1844
      %v2080 = vld [vmem:[#allocation1] sm:$0xff]
      %2081 = vst [vmem:[#allocation1] ss:$9 sm:$0xff] %v1847
      %2083 = vst [vmem:[%s1973] ss:$9 sm:$0xff] %v1850
      %2085 = vst [vmem:[%s1976] ss:$9 sm:$0xff] %v1853
      %2087 = vst [vmem:[%s1979] ss:$9 sm:$0xff] %v1856
      %2088 = vst [vmem:[%s1981] ss:$9 sm:$0xff] %v1859
      %2090 = vst [vmem:[%s1984] ss:$9 sm:$0xff] %v1862
      %2092 = vst [vmem:[%s1987] ss:$9 sm:$0xff] %v1865
      %2093 = vst [vmem:[%s1989] ss:$9 sm:$0xff] %v1868
      %v2094 = vld [vmem:[#allocation1] sm:$0xff]
      %2096 = vst [vmem:[#allocation1] ss:$9 sm:$0xff] %v1871
      %2098 = vst [vmem:[%s1973] ss:$9 sm:$0xff] %v1874
      %2100 = vst [vmem:[%s1976] ss:$9 sm:$0xff] %v1877
      %2101 = vst [vmem:[%s1979] ss:$9 sm:$0xff] %v1880
      %2103 = vst [vmem:[%s1981] ss:$9 sm:$0xff] %v1883
      %2105 = vst [vmem:[%s1984] ss:$9 sm:$0xff] %v1886
      %2106 = vst [vmem:[%s1987] ss:$9 sm:$0xff] %v1889
      %2108 = vst [vmem:[%s1989] ss:$9 sm:$0xff] %v1892
      %v2109 = vld [vmem:[#allocation1] sm:$0xff]
      %2111 = vst [vmem:[#allocation1] ss:$9 sm:$0xff] %v1895
      %2113 = vst [vmem:[%s1973] ss:$9 sm:$0xff] %v1898
      %2114 = vst [vmem:[%s1976] ss:$9 sm:$0xff] %v1901
      %2116 = vst [vmem:[%s1979] ss:$9 sm:$0xff] %v1904
      %2118 = vst [vmem:[%s1981] ss:$9 sm:$0xff] %v1907
      %2119 = vst [vmem:[%s1984] ss:$9 sm:$0xff] %v1910
      %2121 = vst [vmem:[%s1987] ss:$9 sm:$0xff] %v1913
      %2123 = vst [vmem:[%s1989] ss:$9 sm:$0xff] %v1916
      %v2124 = vld [vmem:[#allocation1] sm:$0xff]
      %2126 = vst [vmem:[#allocation1] ss:$9 sm:$0xff] %v1919
      %2127 = vst [vmem:[%s1973] ss:$9 sm:$0xff] %v1922
      %2129 = vst [vmem:[%s1976] ss:$9 sm:$0xff] %v1925
      %2131 = vst [vmem:[%s1979] ss:$9 sm:$0xff] %v1928
      %2132 = vst [vmem:[%s1981] ss:$9 sm:$0xff] %v1931
      %2134 = vst [vmem:[%s1984] ss:$9 sm:$0xff] %v1934
      %2136 = vst [vmem:[%s1987] ss:$9 sm:$0xff] %v1937
      %2138 = vst [vmem:[%s1989] ss:$9 sm:$0xff] %v1940
      %v2139 = vld [vmem:[#allocation1] sm:$0xff]
      %2140 = vst [vmem:[#allocation1] ss:$9 sm:$0xff] %v1943
      %2142 = vst [vmem:[%s1973] ss:$9 sm:$0xff] %v1946
      %2144 = vst [vmem:[%s1976] ss:$9 sm:$0xff] %v1949
      %2145 = vst [vmem:[%s1979] ss:$9 sm:$0xff] %v1952
      %2147 = vst [vmem:[%s1981] ss:$9 sm:$0xff] %v1955
      %2149 = vst [vmem:[%s1984] ss:$9 sm:$0xff] %v1958
      %2151 = vst [vmem:[%s1987] ss:$9 sm:$0xff] %v1961
      %2152 = vst [vmem:[%s1989] ss:$9 sm:$0xff] %v1964
      %v2153 = vld [vmem:[#allocation1] sm:$0xff]
      %2155 = vst [vmem:[#allocation1] ss:$9 sm:$0xff] %v1967
      %2157 = vst [vmem:[%s1973] ss:$9 sm:$0xff] %v1970
      %v2158 = vld [vmem:[#allocation1] sm:$0xff]
      %vm2159 = vcmask 293888
      %v2160 = vsel %vm2159, %v1991, 0
      %v2162 = vsel %vm2159, %v2006, 0
      %v2164 = vsel %vm2159, %v2021, 0
      %v2166 = vsel %vm2159, %v2036, 0
      %v2168 = vsel %vm2159, %v2050, 0
      %v2170 = vsel %vm2159, %v2065, 0
      %v2172 = vsel %vm2159, %v2080, 0
      %v2174 = vsel %vm2159, %v2094, 0
      %v2176 = vsel %vm2159, %v2109, 0
      %v2178 = vsel %vm2159, %v2124, 0
      %v2180 = vsel %vm2159, %v2139, 0
      %v2182 = vsel %vm2159, %v2153, 0
      %v2184 = vsel %vm2159, %v2158, 0
      %vm2186 = vcmask 1041408
      %v2188 = vsel %vm2186, %v1616, 0
      %2190 = vmatpush.bf16.msra.mxu0 0
      %2191 = vmatpush.bf16.msra.mxu0 0
      %2192 = vmatpush.bf16.msra.mxu0 0
      %2193 = vmatpush.bf16.msra.mxu0 0
      %2194 = vmatpush.bf16.msra.mxu0 0
      %2195 = vmatpush.bf16.msra.mxu0 %v2188
      %2196 = vmatpush.bf16.msra.mxu0 %v1615
      %2197 = vmatpush.bf16.msra.mxu0 %v1614
      %2198 = vmatmul.bf16.gmra.mxu0 %v2160
      %v2199 = vpop.f32.mrf.mxu0
      %v2200 = vadd.f32 0.0, %v2199
      %v2201 = vpop.f32.mrf.mxu0
      %v2202 = vadd.f32 0.0, %v2201
      %2203 = vmatmul.bf16.gmra.mxu0 %v2162
      %v2204 = vpop.f32.mrf.mxu0
      %v2205 = vadd.f32 0.0, %v2204
      %v2206 = vpop.f32.mrf.mxu0
      %v2207 = vadd.f32 0.0, %v2206
      %2208 = vmatmul.bf16.gmra.mxu0 %v2164
      %v2209 = vpop.f32.mrf.mxu0
      %v2210 = vadd.f32 0.0, %v2209
      %v2211 = vpop.f32.mrf.mxu0
      %v2212 = vadd.f32 0.0, %v2211
      %2213 = vmatmul.bf16.gmra.mxu0 %v2166
      %v2214 = vpop.f32.mrf.mxu0
      %v2215 = vadd.f32 0.0, %v2214
      %v2216 = vpop.f32.mrf.mxu0
      %v2217 = vadd.f32 0.0, %v2216
      %2218 = vmatmul.bf16.gmra.mxu0 %v2168
      %v2219 = vpop.f32.mrf.mxu0
      %v2220 = vadd.f32 0.0, %v2219
      %v2221 = vpop.f32.mrf.mxu0
      %v2222 = vadd.f32 0.0, %v2221
      %2223 = vmatmul.bf16.gmra.mxu0 %v2170
      %v2224 = vpop.f32.mrf.mxu0
      %v2225 = vadd.f32 0.0, %v2224
      %v2226 = vpop.f32.mrf.mxu0
      %v2227 = vadd.f32 0.0, %v2226
      %2228 = vmatmul.bf16.gmra.mxu0 %v2172
      %v2229 = vpop.f32.mrf.mxu0
      %v2230 = vadd.f32 0.0, %v2229
      %v2231 = vpop.f32.mrf.mxu0
      %v2232 = vadd.f32 0.0, %v2231
      %2233 = vmatmul.bf16.gmra.mxu0 %v2174
      %v2234 = vpop.f32.mrf.mxu0
      %v2235 = vadd.f32 0.0, %v2234
      %v2236 = vpop.f32.mrf.mxu0
      %v2237 = vadd.f32 0.0, %v2236
      %2238 = vmatmul.bf16.gmra.mxu0 %v2176
      %v2239 = vpop.f32.mrf.mxu0
      %v2240 = vadd.f32 0.0, %v2239
      %v2241 = vpop.f32.mrf.mxu0
      %v2242 = vadd.f32 0.0, %v2241
      %2243 = vmatmul.bf16.gmra.mxu0 %v2178
      %v2244 = vpop.f32.mrf.mxu0
      %v2245 = vadd.f32 0.0, %v2244
      %v2246 = vpop.f32.mrf.mxu0
      %v2247 = vadd.f32 0.0, %v2246
      %2248 = vmatmul.bf16.gmra.mxu0 %v2180
      %v2249 = vpop.f32.mrf.mxu0
      %v2250 = vadd.f32 0.0, %v2249
      %v2251 = vpop.f32.mrf.mxu0
      %v2252 = vadd.f32 0.0, %v2251
      %2253 = vmatmul.bf16.gmra.mxu0 %v2182
      %v2254 = vpop.f32.mrf.mxu0
      %v2255 = vadd.f32 0.0, %v2254
      %v2256 = vpop.f32.mrf.mxu0
      %v2257 = vadd.f32 0.0, %v2256
      %2258 = vmatmul.bf16.gmra.mxu0 %v2184
      %v2259 = vpop.f32.mrf.mxu0
      %v2260 = vadd.f32 0.0, %v2259
      %v2261 = vpop.f32.mrf.mxu0
      %2262 = vdwg.mxu0
      %v2288 = vrot.slane %v2200, 2
      %v2289 = vrot.slane %v2200, 4
      %v2290 = vrot.slane %v2200, 6
      %v2291 = vrot.slane %v2202, 2
      %v2292 = vrot.slane %v2202, 4
      %v2293 = vrot.slane %v2202, 6
      %v2294 = vrot.slane %v2205, 2
      %v2295 = vrot.slane %v2205, 4
      %v2296 = vrot.slane %v2205, 6
      %v2297 = vrot.slane %v2207, 2
      %v2298 = vrot.slane %v2207, 4
      %v2299 = vrot.slane %v2207, 6
      %v2300 = vrot.slane %v2210, 2
      %v2301 = vrot.slane %v2210, 4
      %v2302 = vrot.slane %v2210, 6
      %v2303 = vrot.slane %v2212, 2
      %v2304 = vrot.slane %v2212, 4
      %v2305 = vrot.slane %v2212, 6
      %v2306 = vrot.slane %v2215, 2
      %v2307 = vrot.slane %v2215, 4
      %v2308 = vrot.slane %v2215, 6
      %v2309 = vrot.slane %v2217, 2
      %v2310 = vrot.slane %v2217, 4
      %v2311 = vrot.slane %v2217, 6
      %v2312 = vrot.slane %v2220, 2
      %v2313 = vrot.slane %v2220, 4
      %v2314 = vrot.slane %v2220, 6
      %v2315 = vrot.slane %v2222, 2
      %v2316 = vrot.slane %v2222, 4
      %v2317 = vrot.slane %v2222, 6
      %v2318 = vrot.slane %v2225, 2
      %v2319 = vrot.slane %v2225, 4
      %v2320 = vrot.slane %v2225, 6
      %v2321 = vrot.slane %v2227, 2
      %v2322 = vrot.slane %v2227, 4
      %v2323 = vrot.slane %v2227, 6
      %v2324 = vrot.slane %v2230, 2
      %v2325 = vrot.slane %v2230, 4
      %v2326 = vrot.slane %v2230, 6
      %v2327 = vrot.slane %v2232, 2
      %v2328 = vrot.slane %v2232, 4
      %v2329 = vrot.slane %v2232, 6
      %v2330 = vrot.slane %v2235, 2
      %v2331 = vrot.slane %v2235, 4
      %v2332 = vrot.slane %v2235, 6
      %v2333 = vrot.slane %v2237, 2
      %v2334 = vrot.slane %v2237, 4
      %v2335 = vrot.slane %v2237, 6
      %v2336 = vrot.slane %v2240, 2
      %v2337 = vrot.slane %v2240, 4
      %v2338 = vrot.slane %v2240, 6
      %v2339 = vrot.slane %v2242, 2
      %v2340 = vrot.slane %v2242, 4
      %v2341 = vrot.slane %v2242, 6
      %v2342 = vrot.slane %v2245, 2
      %v2343 = vrot.slane %v2245, 4
      %v2344 = vrot.slane %v2245, 6
      %v2345 = vrot.slane %v2247, 2
      %v2346 = vrot.slane %v2247, 4
      %v2347 = vrot.slane %v2247, 6
      %v2348 = vrot.slane %v2250, 2
      %v2349 = vrot.slane %v2250, 4
      %v2350 = vrot.slane %v2250, 6
      %v2351 = vrot.slane %v2252, 2
      %v2352 = vrot.slane %v2252, 4
      %v2353 = vrot.slane %v2252, 6
      %v2354 = vrot.slane %v2255, 2
      %v2355 = vrot.slane %v2255, 4
      %v2356 = vrot.slane %v2255, 6
      %v2357 = vrot.slane %v2257, 2
      %v2358 = vrot.slane %v2257, 4
      %v2359 = vrot.slane %v2257, 6
      %v2360 = vrot.slane %v2260, 2
      %v2434 = vld [vmem:[%s2] sm:$0x1]
      %v2436 = vperm.slane %v2434, 0
      %v2438 = vrot.slane %v2436, 2
      %v2439 = vrot.slane %v2436, 4
      %v2440 = vrot.slane %v2436, 6
      %v2444 = vmul.f32 %v2200, %v2436
      %v2445 = vmul.f32 %v2288, %v2438
      %v2446 = vmul.f32 %v2289, %v2439
      %v2447 = vmul.f32 %v2290, %v2440
      %v2448 = vmul.f32 %v2202, %v2436
      %v2449 = vmul.f32 %v2291, %v2438
      %v2450 = vmul.f32 %v2292, %v2439
      %v2451 = vmul.f32 %v2293, %v2436
      %v2452 = vmul.f32 %v2205, %v2438
      %v2453 = vmul.f32 %v2294, %v2439
      %v2454 = vmul.f32 %v2295, %v2440
      %v2455 = vmul.f32 %v2296, %v2436
      %v2456 = vmul.f32 %v2207, %v2438
      %v2457 = vmul.f32 %v2297, %v2439
      %v2458 = vmul.f32 %v2298, %v2436
      %v2459 = vmul.f32 %v2299, %v2438
      %v2460 = vmul.f32 %v2210, %v2439
      %v2461 = vmul.f32 %v2300, %v2440
      %v2462 = vmul.f32 %v2301, %v2436
      %v2463 = vmul.f32 %v2302, %v2438
      %v2464 = vmul.f32 %v2212, %v2439
      %v2465 = vmul.f32 %v2303, %v2436
      %v2466 = vmul.f32 %v2304, %v2438
      %v2467 = vmul.f32 %v2305, %v2439
      %v2468 = vmul.f32 %v2215, %v2440
      %v2469 = vmul.f32 %v2306, %v2436
      %v2470 = vmul.f32 %v2307, %v2438
      %v2471 = vmul.f32 %v2308, %v2439
      %v2472 = vmul.f32 %v2217, %v2436
      %v2473 = vmul.f32 %v2309, %v2438
      %v2474 = vmul.f32 %v2310, %v2439
      %v2475 = vmul.f32 %v2311, %v2440
      %v2476 = vmul.f32 %v2220, %v2436
      %v2477 = vmul.f32 %v2312, %v2438
      %v2478 = vmul.f32 %v2313, %v2439
      %v2479 = vmul.f32 %v2314, %v2436
      %v2480 = vmul.f32 %v2222, %v2438
      %v2481 = vmul.f32 %v2315, %v2439
      %v2482 = vmul.f32 %v2316, %v2440
      %v2483 = vmul.f32 %v2317, %v2436
      %v2484 = vmul.f32 %v2225, %v2438
      %v2485 = vmul.f32 %v2318, %v2439
      %v2486 = vmul.f32 %v2319, %v2436
      %v2487 = vmul.f32 %v2320, %v2438
      %v2488 = vmul.f32 %v2227, %v2439
      %v2489 = vmul.f32 %v2321, %v2440
      %v2490 = vmul.f32 %v2322, %v2436
      %v2491 = vmul.f32 %v2323, %v2438
      %v2492 = vmul.f32 %v2230, %v2439
      %v2493 = vmul.f32 %v2324, %v2436
      %v2494 = vmul.f32 %v2325, %v2438
      %v2495 = vmul.f32 %v2326, %v2439
      %v2496 = vmul.f32 %v2232, %v2440
      %v2497 = vmul.f32 %v2327, %v2436
      %v2498 = vmul.f32 %v2328, %v2438
      %v2499 = vmul.f32 %v2329, %v2439
      %v2500 = vmul.f32 %v2235, %v2436
      %v2501 = vmul.f32 %v2330, %v2438
      %v2502 = vmul.f32 %v2331, %v2439
      %v2503 = vmul.f32 %v2332, %v2440
      %v2504 = vmul.f32 %v2237, %v2436
      %v2505 = vmul.f32 %v2333, %v2438
      %v2506 = vmul.f32 %v2334, %v2439
      %v2507 = vmul.f32 %v2335, %v2436
      %v2508 = vmul.f32 %v2240, %v2438
      %v2509 = vmul.f32 %v2336, %v2439
      %v2510 = vmul.f32 %v2337, %v2440
      %v2511 = vmul.f32 %v2338, %v2436
      %v2512 = vmul.f32 %v2242, %v2438
      %v2513 = vmul.f32 %v2339, %v2439
      %v2514 = vmul.f32 %v2340, %v2436
      %v2515 = vmul.f32 %v2341, %v2438
      %v2516 = vmul.f32 %v2245, %v2439
      %v2517 = vmul.f32 %v2342, %v2440
      %v2518 = vmul.f32 %v2343, %v2436
      %v2519 = vmul.f32 %v2344, %v2438
      %v2520 = vmul.f32 %v2247, %v2439
      %v2521 = vmul.f32 %v2345, %v2436
      %v2522 = vmul.f32 %v2346, %v2438
      %v2523 = vmul.f32 %v2347, %v2439
      %v2524 = vmul.f32 %v2250, %v2440
      %v2525 = vmul.f32 %v2348, %v2436
      %v2526 = vmul.f32 %v2349, %v2438
      %v2527 = vmul.f32 %v2350, %v2439
      %v2528 = vmul.f32 %v2252, %v2436
      %v2529 = vmul.f32 %v2351, %v2438
      %v2530 = vmul.f32 %v2352, %v2439
      %v2531 = vmul.f32 %v2353, %v2440
      %v2532 = vmul.f32 %v2255, %v2436
      %v2533 = vmul.f32 %v2354, %v2438
      %v2534 = vmul.f32 %v2355, %v2439
      %v2535 = vmul.f32 %v2356, %v2436
      %v2536 = vmul.f32 %v2257, %v2438
      %v2537 = vmul.f32 %v2357, %v2439
      %v2538 = vmul.f32 %v2358, %v2440
      %v2539 = vmul.f32 %v2359, %v2436
      %v2540 = vmul.f32 %v2260, %v2438
      %v2541 = vmul.f32 %v2360, %v2439
      %v2542 = vld [vmem:[%s3] sm:$0x1]
      %v2544 = vperm.slane %v2542, 0
      %v2546 = vrot.slane %v2544, 2
      %v2547 = vrot.slane %v2544, 4
      %v2548 = vrot.slane %v2544, 6
      %v2552 = vadd.f32 %v2444, %v2544
      %v2553 = vadd.f32 %v2445, %v2546
      %v2554 = vadd.f32 %v2446, %v2547
      %v2555 = vadd.f32 %v2447, %v2548
      %v2556 = vadd.f32 %v2448, %v2544
      %v2557 = vadd.f32 %v2449, %v2546
      %v2558 = vadd.f32 %v2450, %v2547
      %v2559 = vadd.f32 %v2451, %v2544
      %v2560 = vadd.f32 %v2452, %v2546
      %v2561 = vadd.f32 %v2453, %v2547
      %v2562 = vadd.f32 %v2454, %v2548
      %v2563 = vadd.f32 %v2455, %v2544
      %v2564 = vadd.f32 %v2456, %v2546
      %v2565 = vadd.f32 %v2457, %v2547
      %v2566 = vadd.f32 %v2458, %v2544
      %v2567 = vadd.f32 %v2459, %v2546
      %v2568 = vadd.f32 %v2460, %v2547
      %v2569 = vadd.f32 %v2461, %v2548
      %v2570 = vadd.f32 %v2462, %v2544
      %v2571 = vadd.f32 %v2463, %v2546
      %v2572 = vadd.f32 %v2464, %v2547
      %v2573 = vadd.f32 %v2465, %v2544
      %v2574 = vadd.f32 %v2466, %v2546
      %v2575 = vadd.f32 %v2467, %v2547
      %v2576 = vadd.f32 %v2468, %v2548
      %v2577 = vadd.f32 %v2469, %v2544
      %v2578 = vadd.f32 %v2470, %v2546
      %v2579 = vadd.f32 %v2471, %v2547
      %v2580 = vadd.f32 %v2472, %v2544
      %v2581 = vadd.f32 %v2473, %v2546
      %v2582 = vadd.f32 %v2474, %v2547
      %v2583 = vadd.f32 %v2475, %v2548
      %v2584 = vadd.f32 %v2476, %v2544
      %v2585 = vadd.f32 %v2477, %v2546
      %v2586 = vadd.f32 %v2478, %v2547
      %v2587 = vadd.f32 %v2479, %v2544
      %v2588 = vadd.f32 %v2480, %v2546
      %v2589 = vadd.f32 %v2481, %v2547
      %v2590 = vadd.f32 %v2482, %v2548
      %v2591 = vadd.f32 %v2483, %v2544
      %v2592 = vadd.f32 %v2484, %v2546
      %v2593 = vadd.f32 %v2485, %v2547
      %v2594 = vadd.f32 %v2486, %v2544
      %v2595 = vadd.f32 %v2487, %v2546
      %v2596 = vadd.f32 %v2488, %v2547
      %v2597 = vadd.f32 %v2489, %v2548
      %v2598 = vadd.f32 %v2490, %v2544
      %v2599 = vadd.f32 %v2491, %v2546
      %v2600 = vadd.f32 %v2492, %v2547
      %v2601 = vadd.f32 %v2493, %v2544
      %v2602 = vadd.f32 %v2494, %v2546
      %v2603 = vadd.f32 %v2495, %v2547
      %v2604 = vadd.f32 %v2496, %v2548
      %v2605 = vadd.f32 %v2497, %v2544
      %v2606 = vadd.f32 %v2498, %v2546
      %v2607 = vadd.f32 %v2499, %v2547
      %v2608 = vadd.f32 %v2500, %v2544
      %v2609 = vadd.f32 %v2501, %v2546
      %v2610 = vadd.f32 %v2502, %v2547
      %v2611 = vadd.f32 %v2503, %v2548
      %v2612 = vadd.f32 %v2504, %v2544
      %v2613 = vadd.f32 %v2505, %v2546
      %v2614 = vadd.f32 %v2506, %v2547
      %v2615 = vadd.f32 %v2507, %v2544
      %v2616 = vadd.f32 %v2508, %v2546
      %v2617 = vadd.f32 %v2509, %v2547
      %v2618 = vadd.f32 %v2510, %v2548
      %v2619 = vadd.f32 %v2511, %v2544
      %v2620 = vadd.f32 %v2512, %v2546
      %v2621 = vadd.f32 %v2513, %v2547
      %v2622 = vadd.f32 %v2514, %v2544
      %v2623 = vadd.f32 %v2515, %v2546
      %v2624 = vadd.f32 %v2516, %v2547
      %v2625 = vadd.f32 %v2517, %v2548
      %v2626 = vadd.f32 %v2518, %v2544
      %v2627 = vadd.f32 %v2519, %v2546
      %v2628 = vadd.f32 %v2520, %v2547
      %v2629 = vadd.f32 %v2521, %v2544
      %v2630 = vadd.f32 %v2522, %v2546
      %v2631 = vadd.f32 %v2523, %v2547
      %v2632 = vadd.f32 %v2524, %v2548
      %v2633 = vadd.f32 %v2525, %v2544
      %v2634 = vadd.f32 %v2526, %v2546
      %v2635 = vadd.f32 %v2527, %v2547
      %v2636 = vadd.f32 %v2528, %v2544
      %v2637 = vadd.f32 %v2529, %v2546
      %v2638 = vadd.f32 %v2530, %v2547
      %v2639 = vadd.f32 %v2531, %v2548
      %v2640 = vadd.f32 %v2532, %v2544
      %v2641 = vadd.f32 %v2533, %v2546
      %v2642 = vadd.f32 %v2534, %v2547
      %v2643 = vadd.f32 %v2535, %v2544
      %v2644 = vadd.f32 %v2536, %v2546
      %v2645 = vadd.f32 %v2537, %v2547
      %v2646 = vadd.f32 %v2538, %v2548
      %v2647 = vadd.f32 %v2539, %v2544
      %v2648 = vadd.f32 %v2540, %v2546
      %v2649 = vadd.f32 %v2541, %v2547
      %v2650 = vmax.f32 %v2552, 0.0
      %v2651 = vmax.f32 %v2553, 0.0
      %v2652 = vmax.f32 %v2554, 0.0
      %v2653 = vmax.f32 %v2555, 0.0
      %v2654 = vmax.f32 %v2556, 0.0
      %v2655 = vmax.f32 %v2557, 0.0
      %v2656 = vmax.f32 %v2558, 0.0
      %v2657 = vmax.f32 %v2559, 0.0
      %v2658 = vmax.f32 %v2560, 0.0
      %v2659 = vmax.f32 %v2561, 0.0
      %v2660 = vmax.f32 %v2562, 0.0
      %v2661 = vmax.f32 %v2563, 0.0
      %v2662 = vmax.f32 %v2564, 0.0
      %v2663 = vmax.f32 %v2565, 0.0
      %v2664 = vmax.f32 %v2566, 0.0
      %v2665 = vmax.f32 %v2567, 0.0
      %v2666 = vmax.f32 %v2568, 0.0
      %v2667 = vmax.f32 %v2569, 0.0
      %v2668 = vmax.f32 %v2570, 0.0
      %v2669 = vmax.f32 %v2571, 0.0
      %v2670 = vmax.f32 %v2572, 0.0
      %v2671 = vmax.f32 %v2573, 0.0
      %v2672 = vmax.f32 %v2574, 0.0
      %v2673 = vmax.f32 %v2575, 0.0
      %v2674 = vmax.f32 %v2576, 0.0
      %v2675 = vmax.f32 %v2577, 0.0
      %v2676 = vmax.f32 %v2578, 0.0
      %v2677 = vmax.f32 %v2579, 0.0
      %v2678 = vmax.f32 %v2580, 0.0
      %v2679 = vmax.f32 %v2581, 0.0
      %v2680 = vmax.f32 %v2582, 0.0
      %v2681 = vmax.f32 %v2583, 0.0
      %v2682 = vmax.f32 %v2584, 0.0
      %v2683 = vmax.f32 %v2585, 0.0
      %v2684 = vmax.f32 %v2586, 0.0
      %v2685 = vmax.f32 %v2587, 0.0
      %v2686 = vmax.f32 %v2588, 0.0
      %v2687 = vmax.f32 %v2589, 0.0
      %v2688 = vmax.f32 %v2590, 0.0
      %v2689 = vmax.f32 %v2591, 0.0
      %v2690 = vmax.f32 %v2592, 0.0
      %v2691 = vmax.f32 %v2593, 0.0
      %v2692 = vmax.f32 %v2594, 0.0
      %v2693 = vmax.f32 %v2595, 0.0
      %v2694 = vmax.f32 %v2596, 0.0
      %v2695 = vmax.f32 %v2597, 0.0
      %v2696 = vmax.f32 %v2598, 0.0
      %v2697 = vmax.f32 %v2599, 0.0
      %v2698 = vmax.f32 %v2600, 0.0
      %v2699 = vmax.f32 %v2601, 0.0
      %v2700 = vmax.f32 %v2602, 0.0
      %v2701 = vmax.f32 %v2603, 0.0
      %v2702 = vmax.f32 %v2604, 0.0
      %v2703 = vmax.f32 %v2605, 0.0
      %v2704 = vmax.f32 %v2606, 0.0
      %v2705 = vmax.f32 %v2607, 0.0
      %v2706 = vmax.f32 %v2608, 0.0
      %v2707 = vmax.f32 %v2609, 0.0
      %v2708 = vmax.f32 %v2610, 0.0
      %v2709 = vmax.f32 %v2611, 0.0
      %v2710 = vmax.f32 %v2612, 0.0
      %v2711 = vmax.f32 %v2613, 0.0
      %v2712 = vmax.f32 %v2614, 0.0
      %v2713 = vmax.f32 %v2615, 0.0
      %v2714 = vmax.f32 %v2616, 0.0
      %v2715 = vmax.f32 %v2617, 0.0
      %v2716 = vmax.f32 %v2618, 0.0
      %v2717 = vmax.f32 %v2619, 0.0
      %v2718 = vmax.f32 %v2620, 0.0
      %v2719 = vmax.f32 %v2621, 0.0
      %v2720 = vmax.f32 %v2622, 0.0
      %v2721 = vmax.f32 %v2623, 0.0
      %v2722 = vmax.f32 %v2624, 0.0
      %v2723 = vmax.f32 %v2625, 0.0
      %v2724 = vmax.f32 %v2626, 0.0
      %v2725 = vmax.f32 %v2627, 0.0
      %v2726 = vmax.f32 %v2628, 0.0
      %v2727 = vmax.f32 %v2629, 0.0
      %v2728 = vmax.f32 %v2630, 0.0
      %v2729 = vmax.f32 %v2631, 0.0
      %v2730 = vmax.f32 %v2632, 0.0
      %v2731 = vmax.f32 %v2633, 0.0
      %v2732 = vmax.f32 %v2634, 0.0
      %v2733 = vmax.f32 %v2635, 0.0
      %v2734 = vmax.f32 %v2636, 0.0
      %v2735 = vmax.f32 %v2637, 0.0
      %v2736 = vmax.f32 %v2638, 0.0
      %v2737 = vmax.f32 %v2639, 0.0
      %v2738 = vmax.f32 %v2640, 0.0
      %v2739 = vmax.f32 %v2641, 0.0
      %v2740 = vmax.f32 %v2642, 0.0
      %v2741 = vmax.f32 %v2643, 0.0
      %v2742 = vmax.f32 %v2644, 0.0
      %v2743 = vmax.f32 %v2645, 0.0
      %v2744 = vmax.f32 %v2646, 0.0
      %v2745 = vmax.f32 %v2647, 0.0
      %v2746 = vmax.f32 %v2648, 0.0
      %v2747 = vmax.f32 %v2649, 0.0
      %2846 = vst [vmem:[#allocation1] ss:$4 sm:$0xff] %v2650
      %s2847 = scalar_lea.vmem [#allocation1], 1
      %2848 = vst [vmem:[%s2847] ss:$4 sm:$0xff] %v2651
      %s2849 = scalar_lea.vmem [#allocation1], 2
      %2850 = vst [vmem:[%s2849] ss:$4 sm:$0xff] %v2652
      %s2851 = scalar_lea.vmem [#allocation1], 3
      %2852 = vst [vmem:[%s2851] ss:$4 sm:$0xff] %v2653
      %s2853 = scalar_lea.vmem [#allocation1], 32
      %2854 = vst [vmem:[%s2853] ss:$4 sm:$0xff] %v2654
      %s2855 = scalar_lea.vmem [#allocation1], 33
      %2856 = vst [vmem:[%s2855] ss:$4 sm:$0xff] %v2655
      %s2857 = scalar_lea.vmem [#allocation1], 34
      %2858 = vst [vmem:[%s2857] ss:$4 sm:$0xff] %v2656
      %v2859 = vld.sshfl [vmem:[#allocation1] sm:$0xff pattern:$0x73625140]
      %v2860 = vld.sshfl [vmem:[#allocation1 + $0x20] sm:$0xff pattern:$0x73625140]
      %2861 = vst [vmem:[#allocation1] ss:$4 sm:$0xff] %v2657
      %2862 = vst [vmem:[%s2847] ss:$4 sm:$0xff] %v2658
      %2863 = vst [vmem:[%s2849] ss:$4 sm:$0xff] %v2659
      %2864 = vst [vmem:[%s2851] ss:$4 sm:$0xff] %v2660
      %2865 = vst [vmem:[%s2853] ss:$4 sm:$0xff] %v2661
      %2866 = vst [vmem:[%s2855] ss:$4 sm:$0xff] %v2662
      %2867 = vst [vmem:[%s2857] ss:$4 sm:$0xff] %v2663
      %v2868 = vld.sshfl [vmem:[#allocation1] sm:$0xff pattern:$0x73625140]
      %v2869 = vld.sshfl [vmem:[#allocation1 + $0x20] sm:$0xff pattern:$0x73625140]
      %2870 = vst [vmem:[#allocation1] ss:$4 sm:$0xff] %v2664
      %2871 = vst [vmem:[%s2847] ss:$4 sm:$0xff] %v2665
      %2872 = vst [vmem:[%s2849] ss:$4 sm:$0xff] %v2666
      %2873 = vst [vmem:[%s2851] ss:$4 sm:$0xff] %v2667
      %2874 = vst [vmem:[%s2853] ss:$4 sm:$0xff] %v2668
      %2875 = vst [vmem:[%s2855] ss:$4 sm:$0xff] %v2669
      %2876 = vst [vmem:[%s2857] ss:$4 sm:$0xff] %v2670
      %v2877 = vld.sshfl [vmem:[#allocation1] sm:$0xff pattern:$0x73625140]
      %v2878 = vld.sshfl [vmem:[#allocation1 + $0x20] sm:$0xff pattern:$0x73625140]
      %2879 = vst [vmem:[#allocation1] ss:$4 sm:$0xff] %v2671
      %2880 = vst [vmem:[%s2847] ss:$4 sm:$0xff] %v2672
      %2881 = vst [vmem:[%s2849] ss:$4 sm:$0xff] %v2673
      %2882 = vst [vmem:[%s2851] ss:$4 sm:$0xff] %v2674
      %2883 = vst [vmem:[%s2853] ss:$4 sm:$0xff] %v2675
      %2884 = vst [vmem:[%s2855] ss:$4 sm:$0xff] %v2676
      %2885 = vst [vmem:[%s2857] ss:$4 sm:$0xff] %v2677
      %v2886 = vld.sshfl [vmem:[#allocation1] sm:$0xff pattern:$0x73625140]
      %v2887 = vld.sshfl [vmem:[#allocation1 + $0x20] sm:$0xff pattern:$0x73625140]
      %2888 = vst [vmem:[#allocation1] ss:$4 sm:$0xff] %v2678
      %2889 = vst [vmem:[%s2847] ss:$4 sm:$0xff] %v2679
      %2890 = vst [vmem:[%s2849] ss:$4 sm:$0xff] %v2680
      %2891 = vst [vmem:[%s2851] ss:$4 sm:$0xff] %v2681
      %2892 = vst [vmem:[%s2853] ss:$4 sm:$0xff] %v2682
      %2893 = vst [vmem:[%s2855] ss:$4 sm:$0xff] %v2683
      %2894 = vst [vmem:[%s2857] ss:$4 sm:$0xff] %v2684
      %v2895 = vld.sshfl [vmem:[#allocation1] sm:$0xff pattern:$0x73625140]
      %v2896 = vld.sshfl [vmem:[#allocation1 + $0x20] sm:$0xff pattern:$0x73625140]
      %2897 = vst [vmem:[#allocation1] ss:$4 sm:$0xff] %v2685
      %2898 = vst [vmem:[%s2847] ss:$4 sm:$0xff] %v2686
      %2899 = vst [vmem:[%s2849] ss:$4 sm:$0xff] %v2687
      %2900 = vst [vmem:[%s2851] ss:$4 sm:$0xff] %v2688
      %2901 = vst [vmem:[%s2853] ss:$4 sm:$0xff] %v2689
      %2902 = vst [vmem:[%s2855] ss:$4 sm:$0xff] %v2690
      %2903 = vst [vmem:[%s2857] ss:$4 sm:$0xff] %v2691
      %v2904 = vld.sshfl [vmem:[#allocation1] sm:$0xff pattern:$0x73625140]
      %v2905 = vld.sshfl [vmem:[#allocation1 + $0x20] sm:$0xff pattern:$0x73625140]
      %2906 = vst [vmem:[#allocation1] ss:$4 sm:$0xff] %v2692
      %2907 = vst [vmem:[%s2847] ss:$4 sm:$0xff] %v2693
      %2908 = vst [vmem:[%s2849] ss:$4 sm:$0xff] %v2694
      %2909 = vst [vmem:[%s2851] ss:$4 sm:$0xff] %v2695
      %2910 = vst [vmem:[%s2853] ss:$4 sm:$0xff] %v2696
      %2911 = vst [vmem:[%s2855] ss:$4 sm:$0xff] %v2697
      %2912 = vst [vmem:[%s2857] ss:$4 sm:$0xff] %v2698
      %v2913 = vld.sshfl [vmem:[#allocation1] sm:$0xff pattern:$0x73625140]
      %v2914 = vld.sshfl [vmem:[#allocation1 + $0x20] sm:$0xff pattern:$0x73625140]
      %2915 = vst [vmem:[#allocation1] ss:$4 sm:$0xff] %v2699
      %2916 = vst [vmem:[%s2847] ss:$4 sm:$0xff] %v2700
      %2917 = vst [vmem:[%s2849] ss:$4 sm:$0xff] %v2701
      %2918 = vst [vmem:[%s2851] ss:$4 sm:$0xff] %v2702
      %2919 = vst [vmem:[%s2853] ss:$4 sm:$0xff] %v2703
      %2920 = vst [vmem:[%s2855] ss:$4 sm:$0xff] %v2704
      %2921 = vst [vmem:[%s2857] ss:$4 sm:$0xff] %v2705
      %v2922 = vld.sshfl [vmem:[#allocation1] sm:$0xff pattern:$0x73625140]
      %v2923 = vld.sshfl [vmem:[#allocation1 + $0x20] sm:$0xff pattern:$0x73625140]
      %2924 = vst [vmem:[#allocation1] ss:$4 sm:$0xff] %v2706
      %2925 = vst [vmem:[%s2847] ss:$4 sm:$0xff] %v2707
      %2926 = vst [vmem:[%s2849] ss:$4 sm:$0xff] %v2708
      %2927 = vst [vmem:[%s2851] ss:$4 sm:$0xff] %v2709
      %2928 = vst [vmem:[%s2853] ss:$4 sm:$0xff] %v2710
      %2929 = vst [vmem:[%s2855] ss:$4 sm:$0xff] %v2711
      %2930 = vst [vmem:[%s2857] ss:$4 sm:$0xff] %v2712
      %v2931 = vld.sshfl [vmem:[#allocation1] sm:$0xff pattern:$0x73625140]
      %v2932 = vld.sshfl [vmem:[#allocation1 + $0x20] sm:$0xff pattern:$0x73625140]
      %2933 = vst [vmem:[#allocation1] ss:$4 sm:$0xff] %v2713
      %2934 = vst [vmem:[%s2847] ss:$4 sm:$0xff] %v2714
      %2935 = vst [vmem:[%s2849] ss:$4 sm:$0xff] %v2715
      %2936 = vst [vmem:[%s2851] ss:$4 sm:$0xff] %v2716
      %2937 = vst [vmem:[%s2853] ss:$4 sm:$0xff] %v2717
      %2938 = vst [vmem:[%s2855] ss:$4 sm:$0xff] %v2718
      %2939 = vst [vmem:[%s2857] ss:$4 sm:$0xff] %v2719
      %v2940 = vld.sshfl [vmem:[#allocation1] sm:$0xff pattern:$0x73625140]
      %v2941 = vld.sshfl [vmem:[#allocation1 + $0x20] sm:$0xff pattern:$0x73625140]
      %2942 = vst [vmem:[#allocation1] ss:$4 sm:$0xff] %v2720
      %2943 = vst [vmem:[%s2847] ss:$4 sm:$0xff] %v2721
      %2944 = vst [vmem:[%s2849] ss:$4 sm:$0xff] %v2722
      %2945 = vst [vmem:[%s2851] ss:$4 sm:$0xff] %v2723
      %2946 = vst [vmem:[%s2853] ss:$4 sm:$0xff] %v2724
      %2947 = vst [vmem:[%s2855] ss:$4 sm:$0xff] %v2725
      %2948 = vst [vmem:[%s2857] ss:$4 sm:$0xff] %v2726
      %v2949 = vld.sshfl [vmem:[#allocation1] sm:$0xff pattern:$0x73625140]
      %v2950 = vld.sshfl [vmem:[#allocation1 + $0x20] sm:$0xff pattern:$0x73625140]
      %2951 = vst [vmem:[#allocation1] ss:$4 sm:$0xff] %v2727
      %2952 = vst [vmem:[%s2847] ss:$4 sm:$0xff] %v2728
      %2953 = vst [vmem:[%s2849] ss:$4 sm:$0xff] %v2729
      %2954 = vst [vmem:[%s2851] ss:$4 sm:$0xff] %v2730
      %2955 = vst [vmem:[%s2853] ss:$4 sm:$0xff] %v2731
      %2956 = vst [vmem:[%s2855] ss:$4 sm:$0xff] %v2732
      %2957 = vst [vmem:[%s2857] ss:$4 sm:$0xff] %v2733
      %v2958 = vld.sshfl [vmem:[#allocation1] sm:$0xff pattern:$0x73625140]
      %v2959 = vld.sshfl [vmem:[#allocation1 + $0x20] sm:$0xff pattern:$0x73625140]
      %2960 = vst [vmem:[#allocation1] ss:$4 sm:$0xff] %v2734
      %2961 = vst [vmem:[%s2847] ss:$4 sm:$0xff] %v2735
      %2962 = vst [vmem:[%s2849] ss:$4 sm:$0xff] %v2736
      %2963 = vst [vmem:[%s2851] ss:$4 sm:$0xff] %v2737
      %2964 = vst [vmem:[%s2853] ss:$4 sm:$0xff] %v2738
      %2965 = vst [vmem:[%s2855] ss:$4 sm:$0xff] %v2739
      %2966 = vst [vmem:[%s2857] ss:$4 sm:$0xff] %v2740
      %v2967 = vld.sshfl [vmem:[#allocation1] sm:$0xff pattern:$0x73625140]
      %v2968 = vld.sshfl [vmem:[#allocation1 + $0x20] sm:$0xff pattern:$0x73625140]
      %2969 = vst [vmem:[#allocation1] ss:$4 sm:$0xff] %v2741
      %2970 = vst [vmem:[%s2847] ss:$4 sm:$0xff] %v2742
      %2971 = vst [vmem:[%s2849] ss:$4 sm:$0xff] %v2743
      %2972 = vst [vmem:[%s2851] ss:$4 sm:$0xff] %v2744
      %2973 = vst [vmem:[%s2853] ss:$4 sm:$0xff] %v2745
      %2974 = vst [vmem:[%s2855] ss:$4 sm:$0xff] %v2746
      %2975 = vst [vmem:[%s2857] ss:$4 sm:$0xff] %v2747
      %v2976 = vld.sshfl [vmem:[#allocation1] sm:$0xff pattern:$0x73625140]
      %v2977 = vld.sshfl [vmem:[#allocation1 + $0x20] sm:$0xff pattern:$0x73625140]
      %3006 = vst.msk [vmem:[%s197] sm:$0xff] %vm1552, %v2859
      %vm3007 = vcmask 259072
      %3008 = vst.msk [vmem:[%s197 + $0x8] sm:$0x3f] %vm3007, %v2860
      %3009 = vst.msk [vmem:[%s197 + $0x10] sm:$0xff] %vm1552, %v2868
      %3010 = vst.msk [vmem:[%s197 + $0x18] sm:$0x3f] %vm3007, %v2869
      %3011 = vst.msk [vmem:[%s197 + $0x20] sm:$0xff] %vm1552, %v2877
      %3012 = vst.msk [vmem:[%s197 + $0x28] sm:$0x3f] %vm3007, %v2878
      %3013 = vst.msk [vmem:[%s197 + $0x30] sm:$0xff] %vm1552, %v2886
      %3014 = vst.msk [vmem:[%s197 + $0x38] sm:$0x3f] %vm3007, %v2887
      %3015 = vst.msk [vmem:[%s197 + $0x40] sm:$0xff] %vm1552, %v2895
      %3016 = vst.msk [vmem:[%s197 + $0x48] sm:$0x3f] %vm3007, %v2896
      %3017 = vst.msk [vmem:[%s197 + $0x50] sm:$0xff] %vm1552, %v2904
      %3018 = vst.msk [vmem:[%s197 + $0x58] sm:$0x3f] %vm3007, %v2905
      %3019 = vst.msk [vmem:[%s197 + $0x60] sm:$0xff] %vm1552, %v2913
      %3020 = vst.msk [vmem:[%s197 + $0x68] sm:$0x3f] %vm3007, %v2914
      %3021 = vst.msk [vmem:[%s197 + $0x70] sm:$0xff] %vm1552, %v2922
      %3022 = vst.msk [vmem:[%s197 + $0x78] sm:$0x3f] %vm3007, %v2923
      %3023 = vst.msk [vmem:[%s197 + $0x80] sm:$0xff] %vm1552, %v2931
      %3024 = vst.msk [vmem:[%s197 + $0x88] sm:$0x3f] %vm3007, %v2932
      %3025 = vst.msk [vmem:[%s197 + $0x90] sm:$0xff] %vm1552, %v2940
      %3026 = vst.msk [vmem:[%s197 + $0x98] sm:$0x3f] %vm3007, %v2941
      %3027 = vst.msk [vmem:[%s197 + $0xa0] sm:$0xff] %vm1552, %v2949
      %3028 = vst.msk [vmem:[%s197 + $0xa8] sm:$0x3f] %vm3007, %v2950
      %3029 = vst.msk [vmem:[%s197 + $0xb0] sm:$0xff] %vm1552, %v2958
      %3030 = vst.msk [vmem:[%s197 + $0xb8] sm:$0x3f] %vm3007, %v2959
      %3031 = vst.msk [vmem:[%s197 + $0xc0] sm:$0xff] %vm1552, %v2967
      %3032 = vst.msk [vmem:[%s197 + $0xc8] sm:$0x3f] %vm3007, %v2968
      %3033 = vst.msk [vmem:[%s197 + $0xd0] sm:$0xff] %vm1552, %v2976
      %3034 = vst.msk [vmem:[%s197 + $0xd8] sm:$0x3f] %vm3007, %v2977
      %p3035 = scmp.lt.s32.totalorder %s15, 1
      %s3036 = scalar_select %p3035, %s15, 1
      %s3037 = smul.addr %s3036, 28
      %s3038 = smul.addr %s3037, 8
      %s3039 = scalar_lea.vmem %s4, %s3038
      // Predicated region
      $region37: #{tpu_custom_call.1} parent=35 // pred_check
        %p3040 = pneg %p122
      $region38: #{tpu_custom_call.1} parent=35 // pred_check_branch
        %3042 = sbr.rel (%p3040) target = $region40
      $region39: #{tpu_custom_call.1} parent=35 // pred_region
        _
      $region40: #{tpu_custom_call.1} parent=35 // pred_fallthru
        _
    $region36: #{tpu_custom_call.1} parent=5 // pred_fallthru
      _
    %p3043 = scmp.le.s32.totalorder 2, %s10
    // Predicated region
    $region41: #{tpu_custom_call.1} parent=5 // pred_check
      %p3044 = pneg %p3043
    $region42: #{tpu_custom_call.1} parent=5 // pred_check_branch
      %3046 = sbr.rel (%p3044) target = $region44
    $region43: #{tpu_custom_call.1} parent=5 // pred_region
      %s3047 = ssub.s32 %s10, 2
      // Predicated region
      $region45: #{tpu_custom_call.1} parent=43 // pred_check
        %p3048 = pneg %p128
      $region46: #{tpu_custom_call.1} parent=43 // pred_check_branch
        %3050 = sbr.rel (%p3048) target = $region48
      $region47: #{tpu_custom_call.1} parent=43 // pred_region
        %p3051 = scmp.lt.s32.totalorder %s16, 1
        %s3052 = scalar_select %p3051, %s16, 1
        %s3053 = smul.addr %s3052, 28
        %s3054 = smul.addr %s3053, 8
        %s3055 = scalar_lea.vmem %s4, %s3054
      $region48: #{tpu_custom_call.1} parent=43 // pred_fallthru
        _
    $region44: #{tpu_custom_call.1} parent=5 // pred_fallthru
      _
  $region6: #{tpu_custom_call.1} parent=0 // loop_footer
    %s14 = sadd.s32 1, %s10
  $region7: #{tpu_custom_call.1} parent=0 // loop_footer_branch
    %9 = sbr.rel target = $region3
  $region8: #{tpu_custom_call.1} parent=0 // loop_exit
    _

</llo_original>
